<compile_context>
chip_gen: v7x
topology: tpu7x:2x2x1
jax: 0.10.0
libtpu: 0.0.40
codegen_flags: <defaults>
</compile_context>

<pallas_src>
import jax
import jax.numpy as jnp
import numpy as np
from jax.experimental import pallas as pl
from jax.experimental.pallas import tpu as pltpu

EPS = 1e-5


def _make_block_kernel(N, H, W, Cin, Cout, stride, use_ds, use_rnn):
    Ho = (H + 2 - 3) // stride + 1
    Wo = (W + 2 - 3) // stride + 1
    rows = N * Ho
    L = Wo * Cout                      # packed (wo, cout) lane width of activations
    inv_cnt = 1.0 / float(N * Ho * Wo)

    def row_taps(slab, s):
        """slab: (N, Hin+2, K) value (row-padded).  Yields per-kh (rows, K) LHS."""
        K = slab.shape[-1]
        taps = []
        for kh in range(3):
            if s == 1:
                t = slab[:, kh:kh + Ho, :]
            else:
                t = slab[:, kh:kh + (Ho - 1) * s + 1:s, :]
            taps.append(t.reshape(rows, K))
        return taps

    def conv(slab, w_ref, s):
        """3x3 'same' conv as 3 banded matmuls (kw + column padding live in w)."""
        acc = None
        for kh, lhs in enumerate(row_taps(slab, s)):
            y = jnp.dot(lhs, w_ref[kh], preferred_element_type=jnp.float32)
            acc = y if acc is None else acc + y
        return acc

    def group_allsum(v):
        """(1, L) per-(wo, co) partials -> per-channel totals replicated to all
        wo lanes.  Exact f32 adds on the XLU via lane rotations."""
        if (Wo & (Wo - 1)) == 0:       # power-of-two Wo: log2(Wo) doubling steps
            sh = Cout
            while sh < L:
                v = v + pltpu.roll(v, shift=sh, axis=1)
                sh *= 2
            return v
        acc = v                        # general (unexercised here): Wo-1 rotations
        for d in range(1, Wo):
            acc = acc + pltpu.roll(v, shift=d * Cout, axis=1)
        return acc

    def bn(v, g_ref, b_ref):
        # Training-mode BatchNorm2d, fused epilogue: single sum/sumsq pass,
        # biased variance (E[x^2]-mean^2), eps=1e-5, affine scale/shift.
        mean = group_allsum(jnp.sum(v, axis=0, keepdims=True)) * inv_cnt
        ex2 = group_allsum(jnp.sum(v * v, axis=0, keepdims=True)) * inv_cnt
        var = ex2 - mean * mean
        scale = g_ref[...] * jax.lax.rsqrt(var + EPS)
        return v * scale + (b_ref[...] - mean * scale)

    def kernel(*refs):
        refs = list(refs)
        pad_ref = refs.pop()           # bf16 row-padded scratch (N, Ho+2, L)
        out_ref = refs.pop()           # f32 output slab (N, Ho, L)
        it = iter(refs)
        x_ref = next(it)
        xid_ref = None if use_ds else next(it)
        h_ref = next(it) if use_rnn else None
        w1_ref, g1_ref, b1_ref = next(it), next(it), next(it)
        gd_ref, bd_ref = (next(it), next(it)) if use_ds else (None, None)
        w2_ref, g2_ref, b2_ref = next(it), next(it), next(it)
        if use_rnn:
            wr_ref, br_ref = next(it), next(it)

        # conv1 (3x3, stride s); 1x1 downsample fused as extra output lanes
        # (only the centre row tap of w1 carries it).
        y1 = conv(x_ref[...], w1_ref, stride)          # (rows, L) or (rows, 2L)
        r1 = jnp.maximum(bn(y1[:, :L], g1_ref, b1_ref), 0.0)
        if use_ds:
            identity = bn(y1[:, L:], gd_ref, bd_ref)
        else:
            identity = xid_ref[...].reshape(rows, L)    # f32 identity path

        # conv2 (3x3, stride 1) through the bf16 scratch: only the two halo
        # rows need zeroing; the column halo is encoded in the banded weight.
        zrow = jnp.zeros((N, 1, L), pad_ref.dtype)
        pad_ref[:, 0:1, :] = zrow
        pad_ref[:, Ho + 1:Ho + 2, :] = zrow
        pad_ref[:, 1:1 + Ho, :] = r1.reshape(N, Ho, L).astype(pad_ref.dtype)
        o2 = bn(conv(pad_ref[...], w2_ref, 1), g2_ref, b2_ref)

        out = jnp.maximum(o2 + identity, 0.0)

        if use_rnn:
            # conv(cat([out, h], C)) == dot over stacked K = [out-taps ; h-taps]
            pad_ref[:, 1:1 + Ho, :] = out.reshape(N, Ho, L).astype(pad_ref.dtype)
            o_taps = row_taps(pad_ref[...], 1)
            h_taps = row_taps(h_ref[...], 1)
            acc = None
            for kh in range(3):
                lhs = jnp.concatenate([o_taps[kh], h_taps[kh]], axis=-1)
                y = jnp.dot(lhs, wr_ref[kh], preferred_element_type=jnp.float32)
                acc = y if acc is None else acc + y
            out = acc + br_ref[...]

        out_ref[...] = out.reshape(N, Ho, L).astype(out_ref.dtype)

    return kernel, Ho, Wo


def block_forward(x_nchw, params, stride, h_nchw=None):
    """Pallas implementation of Block.forward. Returns NCHW output."""
    N, Cin, H, W = x_nchw.shape
    Cout = params["w1"].shape[0]
    assert H % stride == 0 and W % stride == 0
    use_ds = (stride != 1) or (Cin != Cout)
    use_rnn = h_nchw is not None

    kernel, Ho, Wo = _make_block_kernel(N, H, W, Cin, Cout, stride, use_ds, use_rnn)
    L = Wo * Cout
    f32, bf16 = jnp.float32, jnp.bfloat16

    def to_slab(a_nchw, pad_rows):     # NCHW -> (N, H(+2), W*C) lane-packed slab
        a = jnp.transpose(a_nchw, (0, 2, 3, 1))
        n, hh, ww, cc = a.shape
        a = a.reshape(n, hh, ww * cc)
        if pad_rows:
            a = jnp.pad(a, ((0, 0), (1, 1), (0, 0)))
        return a

    def banded(w_oihw, W_in, Wo_, s):
        """3x3 conv weight -> per-kh banded matrices (3, W_in*Ci, Wo_*Co) that
        fold the kw taps and the column zero-padding into the matmul."""
        Co, Ci = w_oihw.shape[0], w_oihw.shape[1]
        w = jnp.transpose(w_oihw, (2, 3, 1, 0)).astype(f32)      # (kh, kw, Ci, Co)
        sel = np.zeros((3, W_in, Wo_), np.float32)
        for kw in range(3):
            for wo in range(Wo_):
                xc = wo * s + kw - 1
                if 0 <= xc < W_in:
                    sel[kw, xc, wo] = 1.0
        wb = jnp.einsum("kxw,hkio->hxiwo", jnp.asarray(sel), w)
        return wb.reshape(3, W_in * Ci, Wo_ * Co)

    def packed(v):                     # per-channel vector -> (1, Wo*Cout) lanes
        return jnp.tile(v.reshape(1, 1, Cout), (1, Wo, 1)).reshape(1, L).astype(f32)

    # conv1 banded weights, downsample 1x1 fused as extra output lanes.
    wb1 = banded(params["w1"], W, Wo, stride)                    # (3, W*Cin, L)
    if use_ds:
        wd = params["wd"].reshape(Cout, Cin).T.astype(f32)       # (Cin, Cout)
        sel = np.zeros((W, Wo), np.float32)
        for wo in range(Wo):
            sel[wo * stride, wo] = 1.0
        mds = jnp.einsum("xw,io->xiwo", jnp.asarray(sel), wd).reshape(W * Cin, L)
        ds3 = jnp.stack([jnp.zeros_like(mds), mds, jnp.zeros_like(mds)], axis=0)
        wb1 = jnp.concatenate([wb1, ds3], axis=2)                # (3, W*Cin, 2L)
    wb2 = banded(params["w2"], Wo, Wo, 1)                        # (3, L, L)

    args = [to_slab(x_nchw, True).astype(bf16)]                  # bf16 at the source
    if not use_ds:
        args.append(to_slab(x_nchw, False).astype(f32))          # f32 identity path
    if use_rnn:
        args.append(to_slab(h_nchw, True).astype(bf16))
    args += [wb1.astype(bf16), packed(params["g1"]), packed(params["b1"])]
    if use_ds:
        args += [packed(params["gd"]), packed(params["bd"])]
    args += [wb2.astype(bf16), packed(params["g2"]), packed(params["b2"])]
    if use_rnn:
        wbr_o = banded(params["wr"][:, :Cout], Wo, Wo, 1)        # out half
        wbr_h = banded(params["wr"][:, Cout:], Wo, Wo, 1)        # h half
        wbr = jnp.concatenate([wbr_o, wbr_h], axis=1)            # (3, 2L, L)
        args += [wbr.astype(bf16), packed(params["br"])]

    out_shape = jax.ShapeDtypeStruct((N, Ho, L), f32)
    scratch_shape = (N, Ho + 2, L)

    # VMEM sizing: vreg-tile-padded args + output + scratch + live intermediates,
    # capped at 48 MiB so it stays under v7x's 64 MiB physical VMEM.
    def padded_bytes(shape, dtype):
        s = [1, 1] + list(shape)
        s[-1] = -(-s[-1] // 128) * 128
        s[-2] = -(-s[-2] // 8) * 8
        return int(np.prod(s)) * np.dtype(dtype).itemsize

    total = sum(padded_bytes(a.shape, a.dtype) for a in args)
    total += padded_bytes(out_shape.shape, f32)
    total += padded_bytes(scratch_shape, bf16)
    total += 10 * padded_bytes((N * Ho, 2 * L), f32)             # f32/bf16 temps
    vmem_limit = int(min(48 * 1024 * 1024, max(16 * 1024 * 1024, 2 * total)))

    vmem = pl.BlockSpec(memory_space=pltpu.MemorySpace.VMEM)
    out_slab = pl.pallas_call(
        kernel,
        out_shape=out_shape,
        in_specs=[vmem] * len(args),
        out_specs=vmem,
        scratch_shapes=[pltpu.VMEM(scratch_shape, bf16)],
        compiler_params=pltpu.CompilerParams(vmem_limit_bytes=vmem_limit),
    )(*args)
    out = out_slab.reshape(N, Ho, Wo, Cout)
    return jnp.transpose(out, (0, 3, 1, 2))                      # back to NCHW


def reference_block(x, params, stride, h=None):
    """Pure-JAX (XLA) reference mirroring the PyTorch forward, NCHW."""
    def conv(v, w, s, p):
        return jax.lax.conv_general_dilated(
            v, w, (s, s), [(p, p), (p, p)],
            dimension_numbers=("NCHW", "OIHW", "NCHW"))

    def bn(v, g, b):
        mean = jnp.mean(v, axis=(0, 2, 3), keepdims=True)
        var = jnp.mean(jnp.square(v - mean), axis=(0, 2, 3), keepdims=True)
        return ((v - mean) / jnp.sqrt(var + EPS)) * g.reshape(1, -1, 1, 1) \
               + b.reshape(1, -1, 1, 1)

    Cin = x.shape[1]
    Cout = params["w1"].shape[0]
    if stride != 1 or Cin != Cout:
        identity = bn(conv(x, params["wd"], stride, 0), params["gd"], params["bd"])
    else:
        identity = x
    out = jax.nn.relu(bn(conv(x, params["w1"], stride, 1), params["g1"], params["b1"]))
    out = bn(conv(out, params["w2"], 1, 1), params["g2"], params["b2"])
    out = jax.nn.relu(out + identity)
    if h is not None:
        comb = jnp.concatenate([out, h], axis=1)
        out = conv(comb, params["wr"], 1, 1) + params["br"].reshape(1, -1, 1, 1)
    return out


if __name__ == "__main__":
    # Small shapes consistent with the module: Block(in=4, out=8, stride=1)
    N, Cin, Cout, H, W, stride = 2, 4, 8, 16, 16, 1

    key = jax.random.PRNGKey(0)
    ks = jax.random.split(key, 14)
    normal = jax.random.normal
    params = {
        "w1": 0.2 * normal(ks[0], (Cout, Cin, 3, 3), jnp.float32),
        "g1": 1.0 + 0.1 * normal(ks[1], (Cout,), jnp.float32),
        "b1": 0.1 * normal(ks[2], (Cout,), jnp.float32),
        "w2": 0.2 * normal(ks[3], (Cout, Cout, 3, 3), jnp.float32),
        "g2": 1.0 + 0.1 * normal(ks[4], (Cout,), jnp.float32),
        "b2": 0.1 * normal(ks[5], (Cout,), jnp.float32),
        "wd": 0.2 * normal(ks[6], (Cout, Cin, 1, 1), jnp.float32),
        "gd": 1.0 + 0.1 * normal(ks[7], (Cout,), jnp.float32),
        "bd": 0.1 * normal(ks[8], (Cout,), jnp.float32),
        "wr": 0.2 * normal(ks[9], (Cout, 2 * Cout, 3, 3), jnp.float32),
        "br": 0.1 * normal(ks[10], (Cout,), jnp.float32),
    }
    x = normal(ks[11], (N, Cin, H, W), jnp.float32)      # NCHW, like the torch module
    h = normal(ks[12], (N, Cout, H, W), jnp.float32)     # hidden state for ConvRNN

    out = jax.block_until_ready(block_forward(x, params, stride, h_nchw=h))
    ref = jax.block_until_ready(reference_block(x, params, stride, h=h))
    assert out.shape == ref.shape == (N, Cout, H // stride, W // stride)
    err = float(np.max(np.abs(np.asarray(out) - np.asarray(ref))))
    assert np.allclose(np.asarray(out), np.asarray(ref), rtol=5e-2, atol=5e-2), (
        "mismatch: max abs diff %e" % err)

    print("KERNEL_OK")
</pallas_src>

<mosaic_0001>
module attributes {stable_mosaic.version = 11 : i64} {
  func.func @kernel(%arg0: memref<2x18x64xbf16, #tpu.memory_space<vmem>>, %arg1: memref<2x18x128xbf16, #tpu.memory_space<vmem>>, %arg2: memref<3x64x256xbf16, #tpu.memory_space<vmem>>, %arg3: memref<1x128xf32, #tpu.memory_space<vmem>>, %arg4: memref<1x128xf32, #tpu.memory_space<vmem>>, %arg5: memref<1x128xf32, #tpu.memory_space<vmem>>, %arg6: memref<1x128xf32, #tpu.memory_space<vmem>>, %arg7: memref<3x128x128xbf16, #tpu.memory_space<vmem>>, %arg8: memref<1x128xf32, #tpu.memory_space<vmem>>, %arg9: memref<1x128xf32, #tpu.memory_space<vmem>>, %arg10: memref<3x256x128xbf16, #tpu.memory_space<vmem>>, %arg11: memref<1x128xf32, #tpu.memory_space<vmem>>, %arg12: memref<2x16x128xf32, #tpu.memory_space<vmem>>, %arg13: memref<2x18x128xbf16, #tpu.memory_space<vmem>>) attributes {dimension_semantics = [], scalar_prefetch = 0 : i64, scratch_operands = 1 : i64, tpu.core_type = #tpu.core_type<tc>} {
    %c0 = arith.constant 0 : index
    %c0_0 = arith.constant 0 : index
    %c0_1 = arith.constant 0 : index
    %0 = vector.load %arg0[%c0, %c0_0, %c0_1] : memref<2x18x64xbf16, #tpu.memory_space<vmem>>, vector<2x18x64xbf16>
    %1 = vector.extract_strided_slice %0 {offsets = [0, 0, 0], sizes = [2, 16, 64], strides = [1, 1, 1]} : vector<2x18x64xbf16> to vector<2x16x64xbf16>
    %2 = vector.shape_cast %1 : vector<2x16x64xbf16> to vector<32x64xbf16>
    %3 = vector.extract_strided_slice %0 {offsets = [0, 1, 0], sizes = [2, 16, 64], strides = [1, 1, 1]} : vector<2x18x64xbf16> to vector<2x16x64xbf16>
    %4 = vector.shape_cast %3 : vector<2x16x64xbf16> to vector<32x64xbf16>
    %5 = vector.extract_strided_slice %0 {offsets = [0, 2, 0], sizes = [2, 16, 64], strides = [1, 1, 1]} : vector<2x18x64xbf16> to vector<2x16x64xbf16>
    %6 = vector.shape_cast %5 : vector<2x16x64xbf16> to vector<32x64xbf16>
    %c0_2 = arith.constant 0 : index
    %c0_3 = arith.constant 0 : index
    %c0_4 = arith.constant 0 : index
    %7 = vector.load %arg2[%c0_2, %c0_3, %c0_4] : memref<3x64x256xbf16, #tpu.memory_space<vmem>>, vector<1x64x256xbf16>
    %8 = vector.shape_cast %7 : vector<1x64x256xbf16> to vector<64x256xbf16>
    %cst = arith.constant dense<0.000000e+00> : vector<32x256xf32>
    %9 = tpu.matmul %2, %8, %cst {dimension_numbers = #tpu.dot_dimension_numbers<[1], [0], [0], [1], [0, 0, 1, 1], [], []>} : vector<32x64xbf16>, vector<64x256xbf16>, vector<32x256xf32> -> vector<32x256xf32>
    %c1 = arith.constant 1 : index
    %c0_5 = arith.constant 0 : index
    %c0_6 = arith.constant 0 : index
    %10 = vector.load %arg2[%c1, %c0_5, %c0_6] : memref<3x64x256xbf16, #tpu.memory_space<vmem>>, vector<1x64x256xbf16>
    %11 = vector.shape_cast %10 : vector<1x64x256xbf16> to vector<64x256xbf16>
    %cst_7 = arith.constant dense<0.000000e+00> : vector<32x256xf32>
    %12 = tpu.matmul %4, %11, %cst_7 {dimension_numbers = #tpu.dot_dimension_numbers<[1], [0], [0], [1], [0, 0, 1, 1], [], []>} : vector<32x64xbf16>, vector<64x256xbf16>, vector<32x256xf32> -> vector<32x256xf32>
    %13 = arith.addf %9, %12 : vector<32x256xf32>
    %c2 = arith.constant 2 : index
    %c0_8 = arith.constant 0 : index
    %c0_9 = arith.constant 0 : index
    %14 = vector.load %arg2[%c2, %c0_8, %c0_9] : memref<3x64x256xbf16, #tpu.memory_space<vmem>>, vector<1x64x256xbf16>
    %15 = vector.shape_cast %14 : vector<1x64x256xbf16> to vector<64x256xbf16>
    %cst_10 = arith.constant dense<0.000000e+00> : vector<32x256xf32>
    %16 = tpu.matmul %6, %15, %cst_10 {dimension_numbers = #tpu.dot_dimension_numbers<[1], [0], [0], [1], [0, 0, 1, 1], [], []>} : vector<32x64xbf16>, vector<64x256xbf16>, vector<32x256xf32> -> vector<32x256xf32>
    %17 = arith.addf %13, %16 : vector<32x256xf32>
    %18 = vector.extract_strided_slice %17 {offsets = [0, 0], sizes = [32, 128], strides = [1, 1]} : vector<32x256xf32> to vector<32x128xf32>
    %cst_11 = arith.constant dense<0.000000e+00> : vector<128xf32>
    %19 = vector.multi_reduction <add>, %18, %cst_11 [0] : vector<32x128xf32> to vector<128xf32>
    %20 = vector.shape_cast %19 : vector<128xf32> to vector<1x128xf32>
    %c8_i32 = arith.constant 8 : i32
    %21 = tpu.dynamic_rotate %20 by %c8_i32 dim 1 : vector<1x128xf32>, i32 -> vector<1x128xf32>
    %22 = arith.addf %20, %21 : vector<1x128xf32>
    %c16_i32 = arith.constant 16 : i32
    %23 = tpu.dynamic_rotate %22 by %c16_i32 dim 1 : vector<1x128xf32>, i32 -> vector<1x128xf32>
    %24 = arith.addf %22, %23 : vector<1x128xf32>
    %c32_i32 = arith.constant 32 : i32
    %25 = tpu.dynamic_rotate %24 by %c32_i32 dim 1 : vector<1x128xf32>, i32 -> vector<1x128xf32>
    %26 = arith.addf %24, %25 : vector<1x128xf32>
    %c64_i32 = arith.constant 64 : i32
    %27 = tpu.dynamic_rotate %26 by %c64_i32 dim 1 : vector<1x128xf32>, i32 -> vector<1x128xf32>
    %28 = arith.addf %26, %27 : vector<1x128xf32>
    %cst_12 = arith.constant 0.001953125 : f32
    %29 = vector.broadcast %cst_12 : f32 to vector<1x128xf32>
    %30 = arith.mulf %28, %29 : vector<1x128xf32>
    %31 = arith.mulf %18, %18 : vector<32x128xf32>
    %cst_13 = arith.constant dense<0.000000e+00> : vector<128xf32>
    %32 = vector.multi_reduction <add>, %31, %cst_13 [0] : vector<32x128xf32> to vector<128xf32>
    %33 = vector.shape_cast %32 : vector<128xf32> to vector<1x128xf32>
    %c8_i32_14 = arith.constant 8 : i32
    %34 = tpu.dynamic_rotate %33 by %c8_i32_14 dim 1 : vector<1x128xf32>, i32 -> vector<1x128xf32>
    %35 = arith.addf %33, %34 : vector<1x128xf32>
    %c16_i32_15 = arith.constant 16 : i32
    %36 = tpu.dynamic_rotate %35 by %c16_i32_15 dim 1 : vector<1x128xf32>, i32 -> vector<1x128xf32>
    %37 = arith.addf %35, %36 : vector<1x128xf32>
    %c32_i32_16 = arith.constant 32 : i32
    %38 = tpu.dynamic_rotate %37 by %c32_i32_16 dim 1 : vector<1x128xf32>, i32 -> vector<1x128xf32>
    %39 = arith.addf %37, %38 : vector<1x128xf32>
    %c64_i32_17 = arith.constant 64 : i32
    %40 = tpu.dynamic_rotate %39 by %c64_i32_17 dim 1 : vector<1x128xf32>, i32 -> vector<1x128xf32>
    %41 = arith.addf %39, %40 : vector<1x128xf32>
    %cst_18 = arith.constant 0.001953125 : f32
    %42 = vector.broadcast %cst_18 : f32 to vector<1x128xf32>
    %43 = arith.mulf %41, %42 : vector<1x128xf32>
    %44 = arith.mulf %30, %30 : vector<1x128xf32>
    %45 = arith.subf %43, %44 : vector<1x128xf32>
    %c0_19 = arith.constant 0 : index
    %c0_20 = arith.constant 0 : index
    %46 = vector.load %arg3[%c0_19, %c0_20] : memref<1x128xf32, #tpu.memory_space<vmem>>, vector<1x128xf32>
    %cst_21 = arith.constant 9.99999974E-6 : f32
    %47 = vector.broadcast %cst_21 : f32 to vector<1x128xf32>
    %48 = arith.addf %45, %47 : vector<1x128xf32>
    %49 = math.rsqrt %48 : vector<1x128xf32>
    %50 = arith.mulf %46, %49 : vector<1x128xf32>
    %51 = vector.broadcast %50 : vector<1x128xf32> to vector<32x128xf32>
    %52 = arith.mulf %18, %51 : vector<32x128xf32>
    %c0_22 = arith.constant 0 : index
    %c0_23 = arith.constant 0 : index
    %53 = vector.load %arg4[%c0_22, %c0_23] : memref<1x128xf32, #tpu.memory_space<vmem>>, vector<1x128xf32>
    %54 = arith.mulf %30, %50 : vector<1x128xf32>
    %55 = arith.subf %53, %54 : vector<1x128xf32>
    %56 = vector.broadcast %55 : vector<1x128xf32> to vector<32x128xf32>
    %57 = arith.addf %52, %56 : vector<32x128xf32>
    %cst_24 = arith.constant 0.000000e+00 : f32
    %58 = vector.broadcast %cst_24 : f32 to vector<32x128xf32>
    %59 = arith.maximumf %57, %58 : vector<32x128xf32>
    %60 = vector.extract_strided_slice %17 {offsets = [0, 128], sizes = [32, 128], strides = [1, 1]} : vector<32x256xf32> to vector<32x128xf32>
    %cst_25 = arith.constant dense<0.000000e+00> : vector<128xf32>
    %61 = vector.multi_reduction <add>, %60, %cst_25 [0] : vector<32x128xf32> to vector<128xf32>
    %62 = vector.shape_cast %61 : vector<128xf32> to vector<1x128xf32>
    %c8_i32_26 = arith.constant 8 : i32
    %63 = tpu.dynamic_rotate %62 by %c8_i32_26 dim 1 : vector<1x128xf32>, i32 -> vector<1x128xf32>
    %64 = arith.addf %62, %63 : vector<1x128xf32>
    %c16_i32_27 = arith.constant 16 : i32
    %65 = tpu.dynamic_rotate %64 by %c16_i32_27 dim 1 : vector<1x128xf32>, i32 -> vector<1x128xf32>
    %66 = arith.addf %64, %65 : vector<1x128xf32>
    %c32_i32_28 = arith.constant 32 : i32
    %67 = tpu.dynamic_rotate %66 by %c32_i32_28 dim 1 : vector<1x128xf32>, i32 -> vector<1x128xf32>
    %68 = arith.addf %66, %67 : vector<1x128xf32>
    %c64_i32_29 = arith.constant 64 : i32
    %69 = tpu.dynamic_rotate %68 by %c64_i32_29 dim 1 : vector<1x128xf32>, i32 -> vector<1x128xf32>
    %70 = arith.addf %68, %69 : vector<1x128xf32>
    %cst_30 = arith.constant 0.001953125 : f32
    %71 = vector.broadcast %cst_30 : f32 to vector<1x128xf32>
    %72 = arith.mulf %70, %71 : vector<1x128xf32>
    %73 = arith.mulf %60, %60 : vector<32x128xf32>
    %cst_31 = arith.constant dense<0.000000e+00> : vector<128xf32>
    %74 = vector.multi_reduction <add>, %73, %cst_31 [0] : vector<32x128xf32> to vector<128xf32>
    %75 = vector.shape_cast %74 : vector<128xf32> to vector<1x128xf32>
    %c8_i32_32 = arith.constant 8 : i32
    %76 = tpu.dynamic_rotate %75 by %c8_i32_32 dim 1 : vector<1x128xf32>, i32 -> vector<1x128xf32>
    %77 = arith.addf %75, %76 : vector<1x128xf32>
    %c16_i32_33 = arith.constant 16 : i32
    %78 = tpu.dynamic_rotate %77 by %c16_i32_33 dim 1 : vector<1x128xf32>, i32 -> vector<1x128xf32>
    %79 = arith.addf %77, %78 : vector<1x128xf32>
    %c32_i32_34 = arith.constant 32 : i32
    %80 = tpu.dynamic_rotate %79 by %c32_i32_34 dim 1 : vector<1x128xf32>, i32 -> vector<1x128xf32>
    %81 = arith.addf %79, %80 : vector<1x128xf32>
    %c64_i32_35 = arith.constant 64 : i32
    %82 = tpu.dynamic_rotate %81 by %c64_i32_35 dim 1 : vector<1x128xf32>, i32 -> vector<1x128xf32>
    %83 = arith.addf %81, %82 : vector<1x128xf32>
    %cst_36 = arith.constant 0.001953125 : f32
    %84 = vector.broadcast %cst_36 : f32 to vector<1x128xf32>
    %85 = arith.mulf %83, %84 : vector<1x128xf32>
    %86 = arith.mulf %72, %72 : vector<1x128xf32>
    %87 = arith.subf %85, %86 : vector<1x128xf32>
    %c0_37 = arith.constant 0 : index
    %c0_38 = arith.constant 0 : index
    %88 = vector.load %arg5[%c0_37, %c0_38] : memref<1x128xf32, #tpu.memory_space<vmem>>, vector<1x128xf32>
    %cst_39 = arith.constant 9.99999974E-6 : f32
    %89 = vector.broadcast %cst_39 : f32 to vector<1x128xf32>
    %90 = arith.addf %87, %89 : vector<1x128xf32>
    %91 = math.rsqrt %90 : vector<1x128xf32>
    %92 = arith.mulf %88, %91 : vector<1x128xf32>
    %93 = vector.broadcast %92 : vector<1x128xf32> to vector<32x128xf32>
    %94 = arith.mulf %60, %93 : vector<32x128xf32>
    %c0_40 = arith.constant 0 : index
    %c0_41 = arith.constant 0 : index
    %95 = vector.load %arg6[%c0_40, %c0_41] : memref<1x128xf32, #tpu.memory_space<vmem>>, vector<1x128xf32>
    %96 = arith.mulf %72, %92 : vector<1x128xf32>
    %97 = arith.subf %95, %96 : vector<1x128xf32>
    %98 = vector.broadcast %97 : vector<1x128xf32> to vector<32x128xf32>
    %99 = arith.addf %94, %98 : vector<32x128xf32>
    %cst_42 = arith.constant 0.000000e+00 : bf16
    %100 = vector.broadcast %cst_42 : bf16 to vector<2x1x128xbf16>
    %c0_43 = arith.constant 0 : index
    %c0_44 = arith.constant 0 : index
    %c0_45 = arith.constant 0 : index
    %101 = vector.load %arg13[%c0_43, %c0_44, %c0_45] : memref<2x18x128xbf16, #tpu.memory_space<vmem>>, vector<2x1x128xbf16>
    tpu.vector_store %arg13[%c0_43, %c0_44, %c0_45], %100 {strides = array<i32>} : memref<2x18x128xbf16, #tpu.memory_space<vmem>>, vector<2x1x128xbf16>,
    %c0_46 = arith.constant 0 : index
    %c17 = arith.constant 17 : index
    %c0_47 = arith.constant 0 : index
    %102 = vector.load %arg13[%c0_46, %c17, %c0_47] : memref<2x18x128xbf16, #tpu.memory_space<vmem>>, vector<2x1x128xbf16>
    tpu.vector_store %arg13[%c0_46, %c17, %c0_47], %100 {strides = array<i32>} : memref<2x18x128xbf16, #tpu.memory_space<vmem>>, vector<2x1x128xbf16>,
    %103 = vector.shape_cast %59 : vector<32x128xf32> to vector<2x16x128xf32>
    %104 = arith.truncf %103 : vector<2x16x128xf32> to vector<2x16x128xbf16>
    %c0_48 = arith.constant 0 : index
    %c1_49 = arith.constant 1 : index
    %c0_50 = arith.constant 0 : index
    %105 = vector.load %arg13[%c0_48, %c1_49, %c0_50] : memref<2x18x128xbf16, #tpu.memory_space<vmem>>, vector<2x16x128xbf16>
    tpu.vector_store %arg13[%c0_48, %c1_49, %c0_50], %104 {strides = array<i32>} : memref<2x18x128xbf16, #tpu.memory_space<vmem>>, vector<2x16x128xbf16>,
    %c0_51 = arith.constant 0 : index
    %c0_52 = arith.constant 0 : index
    %c0_53 = arith.constant 0 : index
    %106 = vector.load %arg13[%c0_51, %c0_52, %c0_53] : memref<2x18x128xbf16, #tpu.memory_space<vmem>>, vector<2x18x128xbf16>
    %107 = vector.extract_strided_slice %106 {offsets = [0, 0, 0], sizes = [2, 16, 128], strides = [1, 1, 1]} : vector<2x18x128xbf16> to vector<2x16x128xbf16>
    %108 = vector.shape_cast %107 : vector<2x16x128xbf16> to vector<32x128xbf16>
    %109 = vector.extract_strided_slice %106 {offsets = [0, 1, 0], sizes = [2, 16, 128], strides = [1, 1, 1]} : vector<2x18x128xbf16> to vector<2x16x128xbf16>
    %110 = vector.shape_cast %109 : vector<2x16x128xbf16> to vector<32x128xbf16>
    %111 = vector.extract_strided_slice %106 {offsets = [0, 2, 0], sizes = [2, 16, 128], strides = [1, 1, 1]} : vector<2x18x128xbf16> to vector<2x16x128xbf16>
    %112 = vector.shape_cast %111 : vector<2x16x128xbf16> to vector<32x128xbf16>
    %c0_54 = arith.constant 0 : index
    %c0_55 = arith.constant 0 : index
    %c0_56 = arith.constant 0 : index
    %113 = vector.load %arg7[%c0_54, %c0_55, %c0_56] : memref<3x128x128xbf16, #tpu.memory_space<vmem>>, vector<1x128x128xbf16>
    %114 = vector.shape_cast %113 : vector<1x128x128xbf16> to vector<128x128xbf16>
    %cst_57 = arith.constant dense<0.000000e+00> : vector<32x128xf32>
    %115 = tpu.matmul %108, %114, %cst_57 {dimension_numbers = #tpu.dot_dimension_numbers<[1], [0], [0], [1], [0, 0, 1, 1], [], []>} : vector<32x128xbf16>, vector<128x128xbf16>, vector<32x128xf32> -> vector<32x128xf32>
    %c1_58 = arith.constant 1 : index
    %c0_59 = arith.constant 0 : index
    %c0_60 = arith.constant 0 : index
    %116 = vector.load %arg7[%c1_58, %c0_59, %c0_60] : memref<3x128x128xbf16, #tpu.memory_space<vmem>>, vector<1x128x128xbf16>
    %117 = vector.shape_cast %116 : vector<1x128x128xbf16> to vector<128x128xbf16>
    %cst_61 = arith.constant dense<0.000000e+00> : vector<32x128xf32>
    %118 = tpu.matmul %110, %117, %cst_61 {dimension_numbers = #tpu.dot_dimension_numbers<[1], [0], [0], [1], [0, 0, 1, 1], [], []>} : vector<32x128xbf16>, vector<128x128xbf16>, vector<32x128xf32> -> vector<32x128xf32>
    %119 = arith.addf %115, %118 : vector<32x128xf32>
    %c2_62 = arith.constant 2 : index
    %c0_63 = arith.constant 0 : index
    %c0_64 = arith.constant 0 : index
    %120 = vector.load %arg7[%c2_62, %c0_63, %c0_64] : memref<3x128x128xbf16, #tpu.memory_space<vmem>>, vector<1x128x128xbf16>
    %121 = vector.shape_cast %120 : vector<1x128x128xbf16> to vector<128x128xbf16>
    %cst_65 = arith.constant dense<0.000000e+00> : vector<32x128xf32>
    %122 = tpu.matmul %112, %121, %cst_65 {dimension_numbers = #tpu.dot_dimension_numbers<[1], [0], [0], [1], [0, 0, 1, 1], [], []>} : vector<32x128xbf16>, vector<128x128xbf16>, vector<32x128xf32> -> vector<32x128xf32>
    %123 = arith.addf %119, %122 : vector<32x128xf32>
    %cst_66 = arith.constant dense<0.000000e+00> : vector<128xf32>
    %124 = vector.multi_reduction <add>, %123, %cst_66 [0] : vector<32x128xf32> to vector<128xf32>
    %125 = vector.shape_cast %124 : vector<128xf32> to vector<1x128xf32>
    %c8_i32_67 = arith.constant 8 : i32
    %126 = tpu.dynamic_rotate %125 by %c8_i32_67 dim 1 : vector<1x128xf32>, i32 -> vector<1x128xf32>
    %127 = arith.addf %125, %126 : vector<1x128xf32>
    %c16_i32_68 = arith.constant 16 : i32
    %128 = tpu.dynamic_rotate %127 by %c16_i32_68 dim 1 : vector<1x128xf32>, i32 -> vector<1x128xf32>
    %129 = arith.addf %127, %128 : vector<1x128xf32>
    %c32_i32_69 = arith.constant 32 : i32
    %130 = tpu.dynamic_rotate %129 by %c32_i32_69 dim 1 : vector<1x128xf32>, i32 -> vector<1x128xf32>
    %131 = arith.addf %129, %130 : vector<1x128xf32>
    %c64_i32_70 = arith.constant 64 : i32
    %132 = tpu.dynamic_rotate %131 by %c64_i32_70 dim 1 : vector<1x128xf32>, i32 -> vector<1x128xf32>
    %133 = arith.addf %131, %132 : vector<1x128xf32>
    %cst_71 = arith.constant 0.001953125 : f32
    %134 = vector.broadcast %cst_71 : f32 to vector<1x128xf32>
    %135 = arith.mulf %133, %134 : vector<1x128xf32>
    %136 = arith.mulf %123, %123 : vector<32x128xf32>
    %cst_72 = arith.constant dense<0.000000e+00> : vector<128xf32>
    %137 = vector.multi_reduction <add>, %136, %cst_72 [0] : vector<32x128xf32> to vector<128xf32>
    %138 = vector.shape_cast %137 : vector<128xf32> to vector<1x128xf32>
    %c8_i32_73 = arith.constant 8 : i32
    %139 = tpu.dynamic_rotate %138 by %c8_i32_73 dim 1 : vector<1x128xf32>, i32 -> vector<1x128xf32>
    %140 = arith.addf %138, %139 : vector<1x128xf32>
    %c16_i32_74 = arith.constant 16 : i32
    %141 = tpu.dynamic_rotate %140 by %c16_i32_74 dim 1 : vector<1x128xf32>, i32 -> vector<1x128xf32>
    %142 = arith.addf %140, %141 : vector<1x128xf32>
    %c32_i32_75 = arith.constant 32 : i32
    %143 = tpu.dynamic_rotate %142 by %c32_i32_75 dim 1 : vector<1x128xf32>, i32 -> vector<1x128xf32>
    %144 = arith.addf %142, %143 : vector<1x128xf32>
    %c64_i32_76 = arith.constant 64 : i32
    %145 = tpu.dynamic_rotate %144 by %c64_i32_76 dim 1 : vector<1x128xf32>, i32 -> vector<1x128xf32>
    %146 = arith.addf %144, %145 : vector<1x128xf32>
    %cst_77 = arith.constant 0.001953125 : f32
    %147 = vector.broadcast %cst_77 : f32 to vector<1x128xf32>
    %148 = arith.mulf %146, %147 : vector<1x128xf32>
    %149 = arith.mulf %135, %135 : vector<1x128xf32>
    %150 = arith.subf %148, %149 : vector<1x128xf32>
    %c0_78 = arith.constant 0 : index
    %c0_79 = arith.constant 0 : index
    %151 = vector.load %arg8[%c0_78, %c0_79] : memref<1x128xf32, #tpu.memory_space<vmem>>, vector<1x128xf32>
    %cst_80 = arith.constant 9.99999974E-6 : f32
    %152 = vector.broadcast %cst_80 : f32 to vector<1x128xf32>
    %153 = arith.addf %150, %152 : vector<1x128xf32>
    %154 = math.rsqrt %153 : vector<1x128xf32>
    %155 = arith.mulf %151, %154 : vector<1x128xf32>
    %156 = vector.broadcast %155 : vector<1x128xf32> to vector<32x128xf32>
    %157 = arith.mulf %123, %156 : vector<32x128xf32>
    %c0_81 = arith.constant 0 : index
    %c0_82 = arith.constant 0 : index
    %158 = vector.load %arg9[%c0_81, %c0_82] : memref<1x128xf32, #tpu.memory_space<vmem>>, vector<1x128xf32>
    %159 = arith.mulf %135, %155 : vector<1x128xf32>
    %160 = arith.subf %158, %159 : vector<1x128xf32>
    %161 = vector.broadcast %160 : vector<1x128xf32> to vector<32x128xf32>
    %162 = arith.addf %157, %161 : vector<32x128xf32>
    %163 = arith.addf %162, %99 : vector<32x128xf32>
    %cst_83 = arith.constant 0.000000e+00 : f32
    %164 = vector.broadcast %cst_83 : f32 to vector<32x128xf32>
    %165 = arith.maximumf %163, %164 : vector<32x128xf32>
    %166 = vector.shape_cast %165 : vector<32x128xf32> to vector<2x16x128xf32>
    %167 = arith.truncf %166 : vector<2x16x128xf32> to vector<2x16x128xbf16>
    %c0_84 = arith.constant 0 : index
    %c1_85 = arith.constant 1 : index
    %c0_86 = arith.constant 0 : index
    %168 = vector.load %arg13[%c0_84, %c1_85, %c0_86] : memref<2x18x128xbf16, #tpu.memory_space<vmem>>, vector<2x16x128xbf16>
    tpu.vector_store %arg13[%c0_84, %c1_85, %c0_86], %167 {strides = array<i32>} : memref<2x18x128xbf16, #tpu.memory_space<vmem>>, vector<2x16x128xbf16>,
    %c0_87 = arith.constant 0 : index
    %c0_88 = arith.constant 0 : index
    %c0_89 = arith.constant 0 : index
    %169 = vector.load %arg13[%c0_87, %c0_88, %c0_89] : memref<2x18x128xbf16, #tpu.memory_space<vmem>>, vector<2x18x128xbf16>
    %170 = vector.extract_strided_slice %169 {offsets = [0, 0, 0], sizes = [2, 16, 128], strides = [1, 1, 1]} : vector<2x18x128xbf16> to vector<2x16x128xbf16>
    %171 = vector.shape_cast %170 : vector<2x16x128xbf16> to vector<32x128xbf16>
    %172 = vector.extract_strided_slice %169 {offsets = [0, 1, 0], sizes = [2, 16, 128], strides = [1, 1, 1]} : vector<2x18x128xbf16> to vector<2x16x128xbf16>
    %173 = vector.shape_cast %172 : vector<2x16x128xbf16> to vector<32x128xbf16>
    %174 = vector.extract_strided_slice %169 {offsets = [0, 2, 0], sizes = [2, 16, 128], strides = [1, 1, 1]} : vector<2x18x128xbf16> to vector<2x16x128xbf16>
    %175 = vector.shape_cast %174 : vector<2x16x128xbf16> to vector<32x128xbf16>
    %c0_90 = arith.constant 0 : index
    %c0_91 = arith.constant 0 : index
    %c0_92 = arith.constant 0 : index
    %176 = vector.load %arg1[%c0_90, %c0_91, %c0_92] : memref<2x18x128xbf16, #tpu.memory_space<vmem>>, vector<2x18x128xbf16>
    %177 = vector.extract_strided_slice %176 {offsets = [0, 0, 0], sizes = [2, 16, 128], strides = [1, 1, 1]} : vector<2x18x128xbf16> to vector<2x16x128xbf16>
    %178 = vector.shape_cast %177 : vector<2x16x128xbf16> to vector<32x128xbf16>
    %179 = vector.extract_strided_slice %176 {offsets = [0, 1, 0], sizes = [2, 16, 128], strides = [1, 1, 1]} : vector<2x18x128xbf16> to vector<2x16x128xbf16>
    %180 = vector.shape_cast %179 : vector<2x16x128xbf16> to vector<32x128xbf16>
    %181 = vector.extract_strided_slice %176 {offsets = [0, 2, 0], sizes = [2, 16, 128], strides = [1, 1, 1]} : vector<2x18x128xbf16> to vector<2x16x128xbf16>
    %182 = vector.shape_cast %181 : vector<2x16x128xbf16> to vector<32x128xbf16>
    %183 = tpu.concatenate %171, %178 in 1 : vector<32x128xbf16>, vector<32x128xbf16> -> vector<32x256xbf16>
    %c0_93 = arith.constant 0 : index
    %c0_94 = arith.constant 0 : index
    %c0_95 = arith.constant 0 : index
    %184 = vector.load %arg10[%c0_93, %c0_94, %c0_95] : memref<3x256x128xbf16, #tpu.memory_space<vmem>>, vector<1x256x128xbf16>
    %185 = vector.shape_cast %184 : vector<1x256x128xbf16> to vector<256x128xbf16>
    %cst_96 = arith.constant dense<0.000000e+00> : vector<32x128xf32>
    %186 = tpu.matmul %183, %185, %cst_96 {dimension_numbers = #tpu.dot_dimension_numbers<[1], [0], [0], [1], [0, 0, 1, 1], [], []>} : vector<32x256xbf16>, vector<256x128xbf16>, vector<32x128xf32> -> vector<32x128xf32>
    %187 = tpu.concatenate %173, %180 in 1 : vector<32x128xbf16>, vector<32x128xbf16> -> vector<32x256xbf16>
    %c1_97 = arith.constant 1 : index
    %c0_98 = arith.constant 0 : index
    %c0_99 = arith.constant 0 : index
    %188 = vector.load %arg10[%c1_97, %c0_98, %c0_99] : memref<3x256x128xbf16, #tpu.memory_space<vmem>>, vector<1x256x128xbf16>
    %189 = vector.shape_cast %188 : vector<1x256x128xbf16> to vector<256x128xbf16>
    %cst_100 = arith.constant dense<0.000000e+00> : vector<32x128xf32>
    %190 = tpu.matmul %187, %189, %cst_100 {dimension_numbers = #tpu.dot_dimension_numbers<[1], [0], [0], [1], [0, 0, 1, 1], [], []>} : vector<32x256xbf16>, vector<256x128xbf16>, vector<32x128xf32> -> vector<32x128xf32>
    %191 = arith.addf %186, %190 : vector<32x128xf32>
    %192 = tpu.concatenate %175, %182 in 1 : vector<32x128xbf16>, vector<32x128xbf16> -> vector<32x256xbf16>
    %c2_101 = arith.constant 2 : index
    %c0_102 = arith.constant 0 : index
    %c0_103 = arith.constant 0 : index
    %193 = vector.load %arg10[%c2_101, %c0_102, %c0_103] : memref<3x256x128xbf16, #tpu.memory_space<vmem>>, vector<1x256x128xbf16>
    %194 = vector.shape_cast %193 : vector<1x256x128xbf16> to vector<256x128xbf16>
    %cst_104 = arith.constant dense<0.000000e+00> : vector<32x128xf32>
    %195 = tpu.matmul %192, %194, %cst_104 {dimension_numbers = #tpu.dot_dimension_numbers<[1], [0], [0], [1], [0, 0, 1, 1], [], []>} : vector<32x256xbf16>, vector<256x128xbf16>, vector<32x128xf32> -> vector<32x128xf32>
    %196 = arith.addf %191, %195 : vector<32x128xf32>
    %c0_105 = arith.constant 0 : index
    %c0_106 = arith.constant 0 : index
    %197 = vector.load %arg11[%c0_105, %c0_106] : memref<1x128xf32, #tpu.memory_space<vmem>>, vector<1x128xf32>
    %198 = vector.broadcast %197 : vector<1x128xf32> to vector<32x128xf32>
    %199 = arith.addf %196, %198 : vector<32x128xf32>
    %200 = vector.shape_cast %199 : vector<32x128xf32> to vector<2x16x128xf32>
    %c0_107 = arith.constant 0 : index
    %c0_108 = arith.constant 0 : index
    %c0_109 = arith.constant 0 : index
    %201 = vector.load %arg12[%c0_107, %c0_108, %c0_109] : memref<2x16x128xf32, #tpu.memory_space<vmem>>, vector<2x16x128xf32>
    tpu.vector_store %arg12[%c0_107, %c0_108, %c0_109], %200 {strides = array<i32>} : memref<2x16x128xf32, #tpu.memory_space<vmem>>, vector<2x16x128xf32>,
    return
  }
}

</mosaic_0001>

<llo_original>
// kernel: tpu_custom_call.1
$region0: #{tpu_custom_call.1}
  #allocation0 [shape = 'u32[]', space=smem, size = 0x4, offset = 0x4, fixed_abs, tag = 'smem constant byte address 0x4 - core index']
  #allocation1 [shape = 'u32[144,128]{1,0:T(1,128)}', space=vmem, size = 0x12000, scoped, tag = 'internal scratch']
  #allocation2 [shape = 'bf16[2,18,128]{2,1,0:T(8,128)(2,1)}', space=vmem, size = 0x3000, scoped, tag = 'scratch operand']
  %s0 = inlined_call_operand.vmem [shape: bf16[2,18,64], index: 0, kind: input, shape index: {}]
  %s1 = inlined_call_operand.vmem [shape: bf16[2,18,128], index: 1, kind: input, shape index: {}]
  %s2 = inlined_call_operand.hbm [shape: bf16[3,64,256], index: 2, kind: input, shape index: {}]
  %s3 = inlined_call_operand.vmem [shape: f32[1,128], index: 3, kind: input, shape index: {}]
  %s4 = inlined_call_operand.vmem [shape: f32[1,128], index: 4, kind: input, shape index: {}]
  %s5 = inlined_call_operand.vmem [shape: f32[1,128], index: 5, kind: input, shape index: {}]
  %s6 = inlined_call_operand.vmem [shape: f32[1,128], index: 6, kind: input, shape index: {}]
  %s7 = inlined_call_operand.hbm [shape: bf16[3,128,128], index: 7, kind: input, shape index: {}]
  %s8 = inlined_call_operand.vmem [shape: f32[1,128], index: 8, kind: input, shape index: {}]
  %s9 = inlined_call_operand.vmem [shape: f32[1,128], index: 9, kind: input, shape index: {}]
  %s10 = inlined_call_operand.hbm [shape: bf16[3,256,128], index: 10, kind: input, shape index: {}]
  %s11 = inlined_call_operand.vmem [shape: f32[1,128], index: 11, kind: input, shape index: {}]
  %s12 = inlined_call_operand.hbm [shape: f32[2,16,128], index: 12, kind: output, shape index: {}]
  %s13 = sld [smem:[#allocation0]]
  $region70: #{tpu_custom_call.1} parent=0
    _
  %s15 = ssub.s32 1, %s13
  %s16 = scalar_select 0, %s15, %s13
  $region1: #{tpu_custom_call.1} parent=0
    #allocation3 [shape = 'u8[98304]{0}', space=vmem, size = 0x18000, scoped, tag = 'input window, operand 2, single buffered']
    #allocation4 [shape = 's32[1]{0}', space=sflag, size = 0x4, scoped, tag = 'scoped memory for tpu_custom_call.1']
    #allocation5 [shape = 's32[1]{0}', space=sflag, size = 0x4, scoped, tag = 'scoped memory for tpu_custom_call.1']
    #allocation6 [shape = 'u8[98304]{0}', space=vmem, size = 0x18000, scoped, tag = 'input window, operand 7, single buffered']
    #allocation7 [shape = 's32[1]{0}', space=sflag, size = 0x4, scoped, tag = 'scoped memory for tpu_custom_call.1']
    #allocation8 [shape = 'u8[196608]{0}', space=vmem, size = 0x30000, scoped, tag = 'input window, operand 10, single buffered']
    #allocation9 [shape = 'u8[16384]{0}', space=vmem, size = 0x4000, scoped, tag = 'output window, operand 0, single buffered']
    %17 = vsyncpa [#allocation4], 0
    %18 = vsyncpa [#allocation7], 0
    %19 = vsyncpa [#allocation5], 0
    // Predicated region
    $region2: #{tpu_custom_call.1} parent=1 // pred_check
      _
    $region3: #{tpu_custom_call.1} parent=1 // pred_check_branch
      %21 = sbr.rel (0) target = $region5
    $region4: #{tpu_custom_call.1} parent=1 // pred_region
      _
    $region5: #{tpu_custom_call.1} parent=1 // pred_fallthru
      _
    // Predicated region
    $region6: #{tpu_custom_call.1} parent=1 // pred_check
      _
    $region7: #{tpu_custom_call.1} parent=1 // pred_check_branch
      %23 = sbr.rel (0) target = $region9
    $region8: #{tpu_custom_call.1} parent=1 // pred_region
      _
    $region9: #{tpu_custom_call.1} parent=1 // pred_fallthru
      _
    // Predicated region
    $region10: #{tpu_custom_call.1} parent=1 // pred_check
      _
    $region11: #{tpu_custom_call.1} parent=1 // pred_check_branch
      %25 = sbr.rel (0) target = $region13
    $region12: #{tpu_custom_call.1} parent=1 // pred_region
      %s27 = ssub.s32 3072, 3072
      %28 = vsyncadd [#allocation4], %s27
      %s29 = sshll.u32 [#allocation3], 4
      %s30 = int_to_ptr.vmem [resolvable:$true] %s29
      %35 = dma.hbm_to_vmem [thread:$0]  %s2, 3072, %s30, [#allocation4], 128, 128, 8
    $region13: #{tpu_custom_call.1} parent=1 // pred_fallthru
      _
    // Predicated region
    $region14: #{tpu_custom_call.1} parent=1 // pred_check
      _
    $region15: #{tpu_custom_call.1} parent=1 // pred_check_branch
      %37 = sbr.rel (0) target = $region17
    $region16: #{tpu_custom_call.1} parent=1 // pred_region
      _
    $region17: #{tpu_custom_call.1} parent=1 // pred_fallthru
      _
    // Predicated region
    $region18: #{tpu_custom_call.1} parent=1 // pred_check
      _
    $region19: #{tpu_custom_call.1} parent=1 // pred_check_branch
      %39 = sbr.rel (0) target = $region21
    $region20: #{tpu_custom_call.1} parent=1 // pred_region
      _
    $region21: #{tpu_custom_call.1} parent=1 // pred_fallthru
      _
    // Predicated region
    $region22: #{tpu_custom_call.1} parent=1 // pred_check
      _
    $region23: #{tpu_custom_call.1} parent=1 // pred_check_branch
      %41 = sbr.rel (0) target = $region25
    $region24: #{tpu_custom_call.1} parent=1 // pred_region
      _
    $region25: #{tpu_custom_call.1} parent=1 // pred_fallthru
      _
    // Predicated region
    $region26: #{tpu_custom_call.1} parent=1 // pred_check
      _
    $region27: #{tpu_custom_call.1} parent=1 // pred_check_branch
      %43 = sbr.rel (0) target = $region29
    $region28: #{tpu_custom_call.1} parent=1 // pred_region
      _
    $region29: #{tpu_custom_call.1} parent=1 // pred_fallthru
      _
    // Predicated region
    $region30: #{tpu_custom_call.1} parent=1 // pred_check
      _
    $region31: #{tpu_custom_call.1} parent=1 // pred_check_branch
      %45 = sbr.rel (0) target = $region33
    $region32: #{tpu_custom_call.1} parent=1 // pred_region
      %s47 = ssub.s32 3072, 3072
      %48 = vsyncadd [#allocation7], %s47
      %s49 = sshll.u32 [#allocation6], 4
      %s50 = int_to_ptr.vmem [resolvable:$true] %s49
      %55 = dma.hbm_to_vmem [thread:$0]  %s7, 3072, %s50, [#allocation7], 64, 64, 4
    $region33: #{tpu_custom_call.1} parent=1 // pred_fallthru
      _
    // Predicated region
    $region34: #{tpu_custom_call.1} parent=1 // pred_check
      _
    $region35: #{tpu_custom_call.1} parent=1 // pred_check_branch
      %57 = sbr.rel (0) target = $region37
    $region36: #{tpu_custom_call.1} parent=1 // pred_region
      _
    $region37: #{tpu_custom_call.1} parent=1 // pred_fallthru
      _
    // Predicated region
    $region38: #{tpu_custom_call.1} parent=1 // pred_check
      _
    $region39: #{tpu_custom_call.1} parent=1 // pred_check_branch
      %59 = sbr.rel (0) target = $region41
    $region40: #{tpu_custom_call.1} parent=1 // pred_region
      _
    $region41: #{tpu_custom_call.1} parent=1 // pred_fallthru
      _
    // Predicated region
    $region42: #{tpu_custom_call.1} parent=1 // pred_check
      _
    $region43: #{tpu_custom_call.1} parent=1 // pred_check_branch
      %61 = sbr.rel (0) target = $region45
    $region44: #{tpu_custom_call.1} parent=1 // pred_region
      %s63 = ssub.s32 6144, 6144
      %64 = vsyncadd [#allocation7], %s63
      %s65 = sshll.u32 [#allocation8], 4
      %s66 = int_to_ptr.vmem [resolvable:$true] %s65
      %71 = dma.hbm_to_vmem [thread:$0]  %s10, 6144, %s66, [#allocation7], 64, 64, 4
    $region45: #{tpu_custom_call.1} parent=1 // pred_fallthru
      _
    // Predicated region
    $region46: #{tpu_custom_call.1} parent=1 // pred_check
      _
    $region47: #{tpu_custom_call.1} parent=1 // pred_check_branch
      %73 = sbr.rel (0) target = $region49
    $region48: #{tpu_custom_call.1} parent=1 // pred_region
      _
    $region49: #{tpu_custom_call.1} parent=1 // pred_fallthru
      _
    // Predicated region
    $region50: #{tpu_custom_call.1} parent=1 // pred_check
      _
    $region51: #{tpu_custom_call.1} parent=1 // pred_check_branch
      %75 = sbr.rel (0) target = $region53
    $region52: #{tpu_custom_call.1} parent=1 // pred_region
      %76 = dma.done [#allocation4], 3072
    $region53: #{tpu_custom_call.1} parent=1 // pred_fallthru
      _
    // Predicated region
    $region54: #{tpu_custom_call.1} parent=1 // pred_check
      _
    $region55: #{tpu_custom_call.1} parent=1 // pred_check_branch
      %78 = sbr.rel (0) target = $region57
    $region56: #{tpu_custom_call.1} parent=1 // pred_region
      %79 = dma.done [#allocation7], 3072
    $region57: #{tpu_custom_call.1} parent=1 // pred_fallthru
      _
    // Predicated region
    $region58: #{tpu_custom_call.1} parent=1 // pred_check
      _
    $region59: #{tpu_custom_call.1} parent=1 // pred_check_branch
      %81 = sbr.rel (0) target = $region61
    $region60: #{tpu_custom_call.1} parent=1 // pred_region
      %82 = dma.done [#allocation7], 6144
    $region61: #{tpu_custom_call.1} parent=1 // pred_fallthru
      _
    %v84 = vld [vmem:[%s0] sm:$0xf]
    %v85 = vld [vmem:[%s0 + $0x4] sm:$0xf]
    %v86 = vld [vmem:[%s0 + $0x8] sm:$0x1]
    %v87 = vld [vmem:[%s0 + $0xc] sm:$0xf]
    %v88 = vld [vmem:[%s0 + $0x10] sm:$0xf]
    %v89 = vld [vmem:[%s0 + $0x14] sm:$0x1]
    %vm90 = vsmask.f32 3328
    %vm91 = vsmask.f32 7440
    %vm92 = vmor %vm90, %vm91
    %v94 = vshrl.u32 %v84, 16
    %v96 = vrot.slane %v94, 4
    %v97 = vshll.u32 %v84, 16
    %v99 = vrot.slane %v97, 5
    %v100 = vor.u32 %v96, %v99
    %v101 = vrot.slane %v100, 4
    %v103 = vshll.u32 %v85, 16
    %v105 = vrot.slane %v103, 5
    %v106 = vsel %vm92, %v101, %v105
    %v107 = vshrl.u32 %v85, 16
    %v109 = vrot.slane %v107, 4
    %v110 = vor.u32 %v109, %v105
    %v111 = vrot.slane %v110, 4
    %v113 = vshll.u32 %v86, 16
    %v115 = vrot.slane %v113, 5
    %v116 = vsel %vm92, %v111, %v115
    %v118 = vshrl.u32 %v87, 16
    %v120 = vrot.slane %v118, 4
    %v121 = vshll.u32 %v87, 16
    %v123 = vrot.slane %v121, 5
    %v124 = vor.u32 %v120, %v123
    %v125 = vrot.slane %v124, 4
    %v127 = vshll.u32 %v88, 16
    %v129 = vrot.slane %v127, 5
    %v130 = vsel %vm92, %v125, %v129
    %v131 = vshrl.u32 %v88, 16
    %v133 = vrot.slane %v131, 4
    %v134 = vor.u32 %v133, %v129
    %v135 = vrot.slane %v134, 4
    %v137 = vshll.u32 %v89, 16
    %v139 = vrot.slane %v137, 5
    %v140 = vsel %vm92, %v135, %v139
    %vm147 = vcmask 1042432
    %vm148 = vcmask 1046532
    %vm149 = vmor %vm147, %vm148
    %v150 = vrot.slane %v84, 5
    %v151 = vrot.slane %v150, 4
    %v152 = vrot.slane %v85, 5
    %v153 = vsel %vm149, %v151, %v152
    %v154 = vrot.slane %v152, 4
    %v155 = vrot.slane %v86, 5
    %v156 = vsel %vm149, %v154, %v155
    %v157 = vrot.slane %v87, 5
    %v158 = vrot.slane %v157, 4
    %v159 = vrot.slane %v88, 5
    %v160 = vsel %vm149, %v158, %v159
    %v161 = vrot.slane %v159, 4
    %v162 = vrot.slane %v89, 5
    %v163 = vsel %vm149, %v161, %v162
    %v164 = vld [vmem:[#allocation3] sm:$0xff]
    %v165 = vld [vmem:[#allocation3 + $0x8] sm:$0xff]
    %v166 = vld [vmem:[#allocation3 + $0x10] sm:$0xff]
    %v167 = vld [vmem:[#allocation3 + $0x18] sm:$0xff]
    %v168 = vld [vmem:[#allocation3 + $0x20] sm:$0xff]
    %v169 = vld [vmem:[#allocation3 + $0x28] sm:$0xff]
    %v170 = vld [vmem:[#allocation3 + $0x30] sm:$0xff]
    %v171 = vld [vmem:[#allocation3 + $0x38] sm:$0xff]
    %s172 = scalar_lea.vmem [#allocation3], 64
    %v173 = vld [vmem:[%s172] sm:$0xff]
    %v174 = vld [vmem:[%s172 + $0x8] sm:$0xff]
    %v175 = vld [vmem:[%s172 + $0x10] sm:$0xff]
    %v176 = vld [vmem:[%s172 + $0x18] sm:$0xff]
    %v177 = vld [vmem:[%s172 + $0x20] sm:$0xff]
    %v178 = vld [vmem:[%s172 + $0x28] sm:$0xff]
    %v179 = vld [vmem:[%s172 + $0x30] sm:$0xff]
    %v180 = vld [vmem:[%s172 + $0x38] sm:$0xff]
    %v181 = vunpack.c.l.b16 %v106
    %v182 = vunpack.c.l.b16 %v116
    %v183 = vunpack.c.l.b16 %v130
    %v184 = vunpack.c.l.b16 %v140
    %v185 = vpack.c.b16 %v182, %v181
    %v186 = vpack.c.b16 %v184, %v183
    %v195 = vunpack.c.l.b16 %v173
    %v196 = vunpack.c.h.b16 %v173
    %v197 = vunpack.c.l.b16 %v174
    %v198 = vunpack.c.h.b16 %v174
    %v199 = vunpack.c.l.b16 %v175
    %v200 = vunpack.c.h.b16 %v175
    %v201 = vunpack.c.l.b16 %v176
    %v202 = vunpack.c.h.b16 %v176
    %v203 = vunpack.c.l.b16 %v177
    %v204 = vunpack.c.h.b16 %v177
    %v205 = vunpack.c.l.b16 %v178
    %v206 = vunpack.c.h.b16 %v178
    %v207 = vunpack.c.l.b16 %v179
    %v208 = vunpack.c.h.b16 %v179
    %v209 = vunpack.c.l.b16 %v180
    %v210 = vunpack.c.h.b16 %v180
    %v211 = vpack.c.b16 %v197, %v195
    %v212 = vpack.c.b16 %v198, %v196
    %v213 = vpack.c.b16 %v201, %v199
    %v214 = vpack.c.b16 %v202, %v200
    %v215 = vpack.c.b16 %v205, %v203
    %v216 = vpack.c.b16 %v206, %v204
    %v217 = vpack.c.b16 %v209, %v207
    %v218 = vpack.c.b16 %v210, %v208
    %vm227 = vcmask 523264
    %v229 = vsel %vm227, %v185, 0
    %v232 = vsel %vm227, %v186, 0
    %234 = vmatprep.subr.bf16.mxu0 %v212
    %235 = vmatpush1.bf16.msra.mxu0 %v211
    %236 = vmatprep.subr.bf16.mxu0 %v214
    %237 = vmatpush1.bf16.msra.mxu0 %v213
    %238 = vmatprep.subr.bf16.mxu0 %v216
    %239 = vmatpush1.bf16.msra.mxu0 %v215
    %240 = vmatprep.subr.bf16.mxu0 %v218
    %241 = vmatpush1.bf16.msra.mxu0 %v217
    %242 = vmatprep.subr.bf16.mxu0 0
    %243 = vmatpush1.bf16.msra.mxu0 0
    %244 = vmatprep.subr.bf16.mxu0 0
    %245 = vmatpush1.bf16.msra.mxu0 0
    %246 = vmatprep.subr.bf16.mxu0 0
    %247 = vmatpush1.bf16.msra.mxu0 0
    %248 = vmatprep.subr.bf16.mxu0 0
    %249 = vmatpush1.bf16.msra.mxu0 0
    %250 = vmatprep.subr.bf16.mxu0 0
    %251 = vmatpush1.bf16.msra.mxu0 0
    %252 = vmatprep.subr.bf16.mxu0 0
    %253 = vmatpush1.bf16.msra.mxu0 0
    %254 = vmatprep.subr.bf16.mxu0 0
    %255 = vmatpush1.bf16.msra.mxu0 0
    %256 = vmatprep.subr.bf16.mxu0 0
    %257 = vmatpush1.bf16.msra.mxu0 0
    %258 = vmatprep.subr.bf16.mxu0 0
    %259 = vmatpush1.bf16.msra.mxu0 0
    %260 = vmatprep.subr.bf16.mxu0 0
    %261 = vmatpush1.bf16.msra.mxu0 0
    %262 = vmatprep.subr.bf16.mxu0 0
    %263 = vmatpush1.bf16.msra.mxu0 0
    %264 = vmatprep.subr.bf16.mxu0 0
    %265 = vmatpush1.bf16.msra.mxu0 0
    %266 = vmatprep.mubr.bf16.mxu0 0
    %267 = vmatmul.mubr.bf16.gmra.mrb[0].mxu0 %v229
    %v268 = vpop.f32.mrb[0].mxu0
    %v269 = vadd.f32 0.0, %v268
    %v270 = vpop.f32.mrb[0].mxu0
    %v271 = vadd.f32 0.0, %v270
    %v272 = vpop.f32.mrb[0].mxu0
    %v273 = vadd.f32 0.0, %v272
    %v274 = vpop.f32.mrb[0].mxu0
    %v275 = vadd.f32 0.0, %v274
    %276 = vmatprep.mubr.bf16.mxu0 0
    %277 = vmatmul.mubr.bf16.gmra.mrb[0].mxu0 %v232
    %v278 = vpop.f32.mrb[0].mxu0
    %v279 = vadd.f32 0.0, %v278
    %v280 = vpop.f32.mrb[0].mxu0
    %v281 = vadd.f32 0.0, %v280
    %v282 = vpop.f32.mrb[0].mxu0
    %v283 = vadd.f32 0.0, %v282
    %v284 = vpop.f32.mrb[0].mxu0
    %v285 = vadd.f32 0.0, %v284
    %286 = vdwg.mxu0
    %v287 = vunpack.c.l.b16 %v84
    %v288 = vunpack.c.l.b16 %v85
    %v289 = vunpack.c.l.b16 %v87
    %v290 = vunpack.c.l.b16 %v88
    %v291 = vpack.c.b16 %v288, %v287
    %v292 = vpack.c.b16 %v290, %v289
    %v301 = vunpack.c.l.b16 %v164
    %v302 = vunpack.c.h.b16 %v164
    %v303 = vunpack.c.l.b16 %v165
    %v304 = vunpack.c.h.b16 %v165
    %v305 = vunpack.c.l.b16 %v166
    %v306 = vunpack.c.h.b16 %v166
    %v307 = vunpack.c.l.b16 %v167
    %v308 = vunpack.c.h.b16 %v167
    %v309 = vunpack.c.l.b16 %v168
    %v310 = vunpack.c.h.b16 %v168
    %v311 = vunpack.c.l.b16 %v169
    %v312 = vunpack.c.h.b16 %v169
    %v313 = vunpack.c.l.b16 %v170
    %v314 = vunpack.c.h.b16 %v170
    %v315 = vunpack.c.l.b16 %v171
    %v316 = vunpack.c.h.b16 %v171
    %v317 = vpack.c.b16 %v303, %v301
    %v318 = vpack.c.b16 %v304, %v302
    %v319 = vpack.c.b16 %v307, %v305
    %v320 = vpack.c.b16 %v308, %v306
    %v321 = vpack.c.b16 %v311, %v309
    %v322 = vpack.c.b16 %v312, %v310
    %v323 = vpack.c.b16 %v315, %v313
    %v324 = vpack.c.b16 %v316, %v314
    %v334 = vsel %vm227, %v291, 0
    %v337 = vsel %vm227, %v292, 0
    %339 = vmatprep.subr.bf16.mxu0 %v318
    %340 = vmatpush1.bf16.msra.mxu0 %v317
    %341 = vmatprep.subr.bf16.mxu0 %v320
    %342 = vmatpush1.bf16.msra.mxu0 %v319
    %343 = vmatprep.subr.bf16.mxu0 %v322
    %344 = vmatpush1.bf16.msra.mxu0 %v321
    %345 = vmatprep.subr.bf16.mxu0 %v324
    %346 = vmatpush1.bf16.msra.mxu0 %v323
    %347 = vmatprep.subr.bf16.mxu0 0
    %348 = vmatpush1.bf16.msra.mxu0 0
    %349 = vmatprep.subr.bf16.mxu0 0
    %350 = vmatpush1.bf16.msra.mxu0 0
    %351 = vmatprep.subr.bf16.mxu0 0
    %352 = vmatpush1.bf16.msra.mxu0 0
    %353 = vmatprep.subr.bf16.mxu0 0
    %354 = vmatpush1.bf16.msra.mxu0 0
    %355 = vmatprep.subr.bf16.mxu0 0
    %356 = vmatpush1.bf16.msra.mxu0 0
    %357 = vmatprep.subr.bf16.mxu0 0
    %358 = vmatpush1.bf16.msra.mxu0 0
    %359 = vmatprep.subr.bf16.mxu0 0
    %360 = vmatpush1.bf16.msra.mxu0 0
    %361 = vmatprep.subr.bf16.mxu0 0
    %362 = vmatpush1.bf16.msra.mxu0 0
    %363 = vmatprep.subr.bf16.mxu0 0
    %364 = vmatpush1.bf16.msra.mxu0 0
    %365 = vmatprep.subr.bf16.mxu0 0
    %366 = vmatpush1.bf16.msra.mxu0 0
    %367 = vmatprep.subr.bf16.mxu0 0
    %368 = vmatpush1.bf16.msra.mxu0 0
    %369 = vmatprep.subr.bf16.mxu0 0
    %370 = vmatpush1.bf16.msra.mxu0 0
    %371 = vmatprep.mubr.bf16.mxu0 0
    %372 = vmatmul.mubr.bf16.gmra.mrb[0].mxu0 %v334
    %v373 = vpop.f32.mrb[0].mxu0
    %v374 = vadd.f32 %v269, %v373
    %v375 = vpop.f32.mrb[0].mxu0
    %v376 = vadd.f32 %v271, %v375
    %v377 = vpop.f32.mrb[0].mxu0
    %v378 = vadd.f32 %v273, %v377
    %v379 = vpop.f32.mrb[0].mxu0
    %v380 = vadd.f32 %v275, %v379
    %381 = vmatprep.mubr.bf16.mxu0 0
    %382 = vmatmul.mubr.bf16.gmra.mrb[0].mxu0 %v337
    %v383 = vpop.f32.mrb[0].mxu0
    %v384 = vadd.f32 %v279, %v383
    %v385 = vpop.f32.mrb[0].mxu0
    %v386 = vadd.f32 %v281, %v385
    %v387 = vpop.f32.mrb[0].mxu0
    %v388 = vadd.f32 %v283, %v387
    %v389 = vpop.f32.mrb[0].mxu0
    %v390 = vadd.f32 %v285, %v389
    %391 = vdwg.mxu0
    %s392 = scalar_lea.vmem [#allocation3], 128
    %v393 = vld [vmem:[%s392] sm:$0xff]
    %v394 = vld [vmem:[%s392 + $0x8] sm:$0xff]
    %v395 = vld [vmem:[%s392 + $0x10] sm:$0xff]
    %v396 = vld [vmem:[%s392 + $0x18] sm:$0xff]
    %v397 = vld [vmem:[%s392 + $0x20] sm:$0xff]
    %v398 = vld [vmem:[%s392 + $0x28] sm:$0xff]
    %v399 = vld [vmem:[%s392 + $0x30] sm:$0xff]
    %v400 = vld [vmem:[%s392 + $0x38] sm:$0xff]
    %v401 = vunpack.c.l.b16 %v153
    %v402 = vunpack.c.l.b16 %v156
    %v403 = vunpack.c.l.b16 %v160
    %v404 = vunpack.c.l.b16 %v163
    %v405 = vpack.c.b16 %v402, %v401
    %v406 = vpack.c.b16 %v404, %v403
    %v415 = vunpack.c.l.b16 %v393
    %v416 = vunpack.c.h.b16 %v393
    %v417 = vunpack.c.l.b16 %v394
    %v418 = vunpack.c.h.b16 %v394
    %v419 = vunpack.c.l.b16 %v395
    %v420 = vunpack.c.h.b16 %v395
    %v421 = vunpack.c.l.b16 %v396
    %v422 = vunpack.c.h.b16 %v396
    %v423 = vunpack.c.l.b16 %v397
    %v424 = vunpack.c.h.b16 %v397
    %v425 = vunpack.c.l.b16 %v398
    %v426 = vunpack.c.h.b16 %v398
    %v427 = vunpack.c.l.b16 %v399
    %v428 = vunpack.c.h.b16 %v399
    %v429 = vunpack.c.l.b16 %v400
    %v430 = vunpack.c.h.b16 %v400
    %v431 = vpack.c.b16 %v417, %v415
    %v432 = vpack.c.b16 %v418, %v416
    %v433 = vpack.c.b16 %v421, %v419
    %v434 = vpack.c.b16 %v422, %v420
    %v435 = vpack.c.b16 %v425, %v423
    %v436 = vpack.c.b16 %v426, %v424
    %v437 = vpack.c.b16 %v429, %v427
    %v438 = vpack.c.b16 %v430, %v428
    %v448 = vsel %vm227, %v405, 0
    %v451 = vsel %vm227, %v406, 0
    %453 = vmatprep.subr.bf16.mxu0 %v432
    %454 = vmatpush1.bf16.msra.mxu0 %v431
    %455 = vmatprep.subr.bf16.mxu0 %v434
    %456 = vmatpush1.bf16.msra.mxu0 %v433
    %457 = vmatprep.subr.bf16.mxu0 %v436
    %458 = vmatpush1.bf16.msra.mxu0 %v435
    %459 = vmatprep.subr.bf16.mxu0 %v438
    %460 = vmatpush1.bf16.msra.mxu0 %v437
    %461 = vmatprep.subr.bf16.mxu0 0
    %462 = vmatpush1.bf16.msra.mxu0 0
    %463 = vmatprep.subr.bf16.mxu0 0
    %464 = vmatpush1.bf16.msra.mxu0 0
    %465 = vmatprep.subr.bf16.mxu0 0
    %466 = vmatpush1.bf16.msra.mxu0 0
    %467 = vmatprep.subr.bf16.mxu0 0
    %468 = vmatpush1.bf16.msra.mxu0 0
    %469 = vmatprep.subr.bf16.mxu0 0
    %470 = vmatpush1.bf16.msra.mxu0 0
    %471 = vmatprep.subr.bf16.mxu0 0
    %472 = vmatpush1.bf16.msra.mxu0 0
    %473 = vmatprep.subr.bf16.mxu0 0
    %474 = vmatpush1.bf16.msra.mxu0 0
    %475 = vmatprep.subr.bf16.mxu0 0
    %476 = vmatpush1.bf16.msra.mxu0 0
    %477 = vmatprep.subr.bf16.mxu0 0
    %478 = vmatpush1.bf16.msra.mxu0 0
    %479 = vmatprep.subr.bf16.mxu0 0
    %480 = vmatpush1.bf16.msra.mxu0 0
    %481 = vmatprep.subr.bf16.mxu0 0
    %482 = vmatpush1.bf16.msra.mxu0 0
    %483 = vmatprep.subr.bf16.mxu0 0
    %484 = vmatpush1.bf16.msra.mxu0 0
    %485 = vmatprep.mubr.bf16.mxu0 0
    %486 = vmatmul.mubr.bf16.gmra.mrb[0].mxu0 %v448
    %v487 = vpop.f32.mrb[0].mxu0
    %v488 = vadd.f32 0.0, %v487
    %v489 = vpop.f32.mrb[0].mxu0
    %v490 = vadd.f32 0.0, %v489
    %v491 = vpop.f32.mrb[0].mxu0
    %v492 = vadd.f32 0.0, %v491
    %v493 = vpop.f32.mrb[0].mxu0
    %v494 = vadd.f32 0.0, %v493
    %495 = vmatprep.mubr.bf16.mxu0 0
    %496 = vmatmul.mubr.bf16.gmra.mrb[0].mxu0 %v451
    %v497 = vpop.f32.mrb[0].mxu0
    %v498 = vadd.f32 0.0, %v497
    %v499 = vpop.f32.mrb[0].mxu0
    %v500 = vadd.f32 0.0, %v499
    %v501 = vpop.f32.mrb[0].mxu0
    %v502 = vadd.f32 0.0, %v501
    %v503 = vpop.f32.mrb[0].mxu0
    %v504 = vadd.f32 0.0, %v503
    %505 = vdwg.mxu0
    %v506 = vadd.f32 %v374, %v488
    %v507 = vadd.f32 %v376, %v490
    %v508 = vadd.f32 %v378, %v492
    %v509 = vadd.f32 %v380, %v494
    %v510 = vadd.f32 %v384, %v498
    %v511 = vadd.f32 %v386, %v500
    %v512 = vadd.f32 %v388, %v502
    %v513 = vadd.f32 %v390, %v504
    %v514 = vadd.f32 %v506, %v508
    %v515 = vadd.f32 %v514, %v510
    %v516 = vadd.f32 %v515, %v512
    %v517 = vrot.slane %v516, 4
    %v518 = vadd.f32 %v516, %v517
    %v519 = vrot.slane %v518, 2
    %v520 = vadd.f32 %v518, %v519
    %v521 = vrot.slane %v520, 1
    %v522 = vadd.f32 %v520, %v521
    %523 = vrot.lane.b32.xlu0 %v522, 8
    %v524 = vpop.permute.xlu0 %523
    %v525 = vadd.f32 %v522, %v524
    %526 = vrot.lane.b32.xlu0 %v525, 16
    %v527 = vpop.permute.xlu0 %526
    %v528 = vadd.f32 %v525, %v527
    %529 = vrot.lane.b32.xlu0 %v528, 32
    %v530 = vpop.permute.xlu0 %529
    %v531 = vadd.f32 %v528, %v530
    %532 = vrot.lane.b32.xlu0 %v531, 64
    %v533 = vpop.permute.xlu0 %532
    %v534 = vadd.f32 %v531, %v533
    %v535 = vmul.f32 %v534, 0.001953125
    %v536 = vmul.f32 %v506, %v506
    %v537 = vmul.f32 %v508, %v508
    %v538 = vmul.f32 %v510, %v510
    %v539 = vmul.f32 %v512, %v512
    %v540 = vadd.f32 %v536, %v537
    %v541 = vadd.f32 %v540, %v538
    %v542 = vadd.f32 %v541, %v539
    %v543 = vrot.slane %v542, 4
    %v544 = vadd.f32 %v542, %v543
    %v545 = vrot.slane %v544, 2
    %v546 = vadd.f32 %v544, %v545
    %v547 = vrot.slane %v546, 1
    %v548 = vadd.f32 %v546, %v547
    %549 = vrot.lane.b32.xlu0 %v548, 8
    %v550 = vpop.permute.xlu0 %549
    %v551 = vadd.f32 %v548, %v550
    %552 = vrot.lane.b32.xlu0 %v551, 16
    %v553 = vpop.permute.xlu0 %552
    %v554 = vadd.f32 %v551, %v553
    %555 = vrot.lane.b32.xlu0 %v554, 32
    %v556 = vpop.permute.xlu0 %555
    %v557 = vadd.f32 %v554, %v556
    %558 = vrot.lane.b32.xlu0 %v557, 64
    %v559 = vpop.permute.xlu0 %558
    %v560 = vadd.f32 %v557, %v559
    %v561 = vmul.f32 %v560, 0.001953125
    %v562 = vmul.f32 %v535, %v535
    %v563 = vsub.f32 %v561, %v562
    %v564 = vld [vmem:[%s3] sm:$0x1]
    %v565 = vadd.f32 %v563, 1e-05
    %v566 = vrsqrt.pop %v565
    %v567 = vmul.f32 %v564, %v566
    %v569 = vlaneseq
    %v570 = vshrl.u32 %v569, 7
    %v571 = vsub.s32 0, %v570
    %v572 = vrot.slane %v567, %v571
    %v574 = vmul.f32 %v506, %v572
    %v575 = vmul.f32 %v508, %v572
    %v576 = vmul.f32 %v510, %v572
    %v577 = vmul.f32 %v512, %v572
    %v578 = vld [vmem:[%s4] sm:$0x1]
    %v579 = vmul.f32 %v535, %v567
    %v580 = vsub.f32 %v578, %v579
    %v582 = vlaneseq
    %v583 = vshrl.u32 %v582, 7
    %v584 = vsub.s32 0, %v583
    %v585 = vrot.slane %v580, %v584
    %v587 = vadd.f32 %v574, %v585
    %v588 = vadd.f32 %v575, %v585
    %v589 = vadd.f32 %v576, %v585
    %v590 = vadd.f32 %v577, %v585
    %v591 = vmax.f32 %v587, 0.0
    %v592 = vmax.f32 %v588, 0.0
    %v593 = vmax.f32 %v589, 0.0
    %v594 = vmax.f32 %v590, 0.0
    %v595 = vadd.f32 %v507, %v509
    %v596 = vadd.f32 %v595, %v511
    %v597 = vadd.f32 %v596, %v513
    %v598 = vrot.slane %v597, 4
    %v599 = vadd.f32 %v597, %v598
    %v600 = vrot.slane %v599, 2
    %v601 = vadd.f32 %v599, %v600
    %v602 = vrot.slane %v601, 1
    %v603 = vadd.f32 %v601, %v602
    %604 = vrot.lane.b32.xlu0 %v603, 8
    %v605 = vpop.permute.xlu0 %604
    %v606 = vadd.f32 %v603, %v605
    %607 = vrot.lane.b32.xlu0 %v606, 16
    %v608 = vpop.permute.xlu0 %607
    %v609 = vadd.f32 %v606, %v608
    %610 = vrot.lane.b32.xlu0 %v609, 32
    %v611 = vpop.permute.xlu0 %610
    %v612 = vadd.f32 %v609, %v611
    %613 = vrot.lane.b32.xlu0 %v612, 64
    %v614 = vpop.permute.xlu0 %613
    %v615 = vadd.f32 %v612, %v614
    %v616 = vmul.f32 %v615, 0.001953125
    %v617 = vmul.f32 %v507, %v507
    %v618 = vmul.f32 %v509, %v509
    %v619 = vmul.f32 %v511, %v511
    %v620 = vmul.f32 %v513, %v513
    %v621 = vadd.f32 %v617, %v618
    %v622 = vadd.f32 %v621, %v619
    %v623 = vadd.f32 %v622, %v620
    %v624 = vrot.slane %v623, 4
    %v625 = vadd.f32 %v623, %v624
    %v626 = vrot.slane %v625, 2
    %v627 = vadd.f32 %v625, %v626
    %v628 = vrot.slane %v627, 1
    %v629 = vadd.f32 %v627, %v628
    %630 = vrot.lane.b32.xlu0 %v629, 8
    %v631 = vpop.permute.xlu0 %630
    %v632 = vadd.f32 %v629, %v631
    %633 = vrot.lane.b32.xlu0 %v632, 16
    %v634 = vpop.permute.xlu0 %633
    %v635 = vadd.f32 %v632, %v634
    %636 = vrot.lane.b32.xlu0 %v635, 32
    %v637 = vpop.permute.xlu0 %636
    %v638 = vadd.f32 %v635, %v637
    %639 = vrot.lane.b32.xlu0 %v638, 64
    %v640 = vpop.permute.xlu0 %639
    %v641 = vadd.f32 %v638, %v640
    %v642 = vmul.f32 %v641, 0.001953125
    %v643 = vmul.f32 %v616, %v616
    %v644 = vsub.f32 %v642, %v643
    %v645 = vld [vmem:[%s5] sm:$0x1]
    %v646 = vadd.f32 %v644, 1e-05
    %v647 = vrsqrt.pop %v646
    %v648 = vmul.f32 %v645, %v647
    %v650 = vlaneseq
    %v651 = vshrl.u32 %v650, 7
    %v652 = vsub.s32 0, %v651
    %v653 = vrot.slane %v648, %v652
    %v655 = vmul.f32 %v507, %v653
    %v656 = vmul.f32 %v509, %v653
    %v657 = vmul.f32 %v511, %v653
    %v658 = vmul.f32 %v513, %v653
    %v659 = vld [vmem:[%s6] sm:$0x1]
    %v660 = vmul.f32 %v616, %v648
    %v661 = vsub.f32 %v659, %v660
    %v663 = vlaneseq
    %v664 = vshrl.u32 %v663, 7
    %v665 = vsub.s32 0, %v664
    %v666 = vrot.slane %v661, %v665
    %v668 = vadd.f32 %v655, %v666
    %v669 = vadd.f32 %v656, %v666
    %v670 = vadd.f32 %v657, %v666
    %v671 = vadd.f32 %v658, %v666
    %vm672 = vcmask 1040384
    %vm673 = vsmask.f32 256
    %vm674 = vmand %vm672, %vm673
    %v675 = vld [vmem:[#allocation2] sm:$0x1]
    %v676 = vsel %vm674, 0, %v675
    %677 = vst [vmem:[#allocation2] sm:$0x1] %v676
    %v678 = vld [vmem:[#allocation2 + $0xc] sm:$0x1]
    %v679 = vsel %vm674, 0, %v678
    %680 = vst [vmem:[#allocation2 + $0xc] sm:$0x1] %v679
    %vm681 = vsmask.f32 7938
    %vm682 = vmand %vm672, %vm681
    %v683 = vld [vmem:[#allocation2 + $0x8] sm:$0x1]
    %v684 = vsel %vm682, 0, %v683
    %685 = vst [vmem:[#allocation2 + $0x8] sm:$0x1] %v684
    %v686 = vld [vmem:[#allocation2 + $0x14] sm:$0x1]
    %v687 = vsel %vm682, 0, %v686
    %688 = vst [vmem:[#allocation2 + $0x14] sm:$0x1] %v687
    %v689 = vpack.c.bf16 %v592, %v591
    %v690 = vpack.c.bf16 %v594, %v593
    %v693 = vunpack.c.l.b16 %v689
    %v694 = vunpack.c.h.b16 %v689
    %v695 = vunpack.c.l.b16 %v690
    %v696 = vunpack.c.h.b16 %v690
    %v697 = vpack.c.b16 %v693, %v693
    %v698 = vpack.c.b16 %v694, %v694
    %v699 = vpack.c.b16 %v695, %v695
    %v700 = vpack.c.b16 %v696, %v696
    %vm701 = vsmask.f32 4368
    %vm702 = vmor %vm673, %vm701
    %v704 = vshrl.u32 %v697, 16
    %v706 = vrot.slane %v704, 7
    %v707 = vshll.u32 %v697, 16
    %v709 = vor.u32 %v706, %v707
    %v710 = vrot.slane %v706, 4
    %v712 = vshrl.u32 %v698, 16
    %v714 = vrot.slane %v712, 7
    %v715 = vshll.u32 %v698, 16
    %v717 = vor.u32 %v714, %v715
    %v718 = vsel %vm702, %v710, %v717
    %v719 = vrot.slane %v714, 4
    %v721 = vshrl.u32 %v699, 16
    %v723 = vrot.slane %v721, 7
    %v724 = vshll.u32 %v699, 16
    %v726 = vor.u32 %v723, %v724
    %v727 = vrot.slane %v723, 4
    %v729 = vshrl.u32 %v700, 16
    %v731 = vrot.slane %v729, 7
    %v732 = vshll.u32 %v700, 16
    %v734 = vor.u32 %v731, %v732
    %v735 = vsel %vm702, %v727, %v734
    %v736 = vrot.slane %v731, 4
    %vm743 = vcmask 1043456
    %vm744 = vmand %vm743, %vm681
    %v745 = vld [vmem:[#allocation2] sm:$0xf]
    %v746 = vsel %vm744, %v709, %v745
    %747 = vst [vmem:[#allocation2] sm:$0xf] %v746
    %748 = vst [vmem:[#allocation2 + $0x4] sm:$0xf] %v718
    %v749 = vld [vmem:[#allocation2 + $0x8] sm:$0x1]
    %v750 = vsel %vm674, %v719, %v749
    %751 = vst [vmem:[#allocation2 + $0x8] sm:$0x1] %v750
    %v752 = vld [vmem:[#allocation2 + $0xc] sm:$0xf]
    %v753 = vsel %vm744, %v726, %v752
    %754 = vst [vmem:[#allocation2 + $0xc] sm:$0xf] %v753
    %755 = vst [vmem:[#allocation2 + $0x10] sm:$0xf] %v735
    %v756 = vld [vmem:[#allocation2 + $0x14] sm:$0x1]
    %v757 = vsel %vm674, %v736, %v756
    %758 = vst [vmem:[#allocation2 + $0x14] sm:$0x1] %v757
    %v759 = vld [vmem:[#allocation2] sm:$0xf]
    %v760 = vld [vmem:[#allocation2 + $0x4] sm:$0xf]
    %v761 = vld [vmem:[#allocation2 + $0x8] sm:$0x1]
    %v762 = vld [vmem:[#allocation2 + $0xc] sm:$0xf]
    %v763 = vld [vmem:[#allocation2 + $0x10] sm:$0xf]
    %v764 = vld [vmem:[#allocation2 + $0x14] sm:$0x1]
    %v766 = vshrl.u32 %v759, 16
    %v768 = vrot.slane %v766, 4
    %v769 = vshll.u32 %v759, 16
    %v771 = vrot.slane %v769, 5
    %v772 = vor.u32 %v768, %v771
    %v773 = vrot.slane %v772, 4
    %v775 = vshll.u32 %v760, 16
    %v777 = vrot.slane %v775, 5
    %v778 = vsel %vm92, %v773, %v777
    %v779 = vshrl.u32 %v760, 16
    %v781 = vrot.slane %v779, 4
    %v782 = vor.u32 %v781, %v777
    %v783 = vrot.slane %v782, 4
    %v785 = vshll.u32 %v761, 16
    %v787 = vrot.slane %v785, 5
    %v788 = vsel %vm92, %v783, %v787
    %v790 = vshrl.u32 %v762, 16
    %v792 = vrot.slane %v790, 4
    %v793 = vshll.u32 %v762, 16
    %v795 = vrot.slane %v793, 5
    %v796 = vor.u32 %v792, %v795
    %v797 = vrot.slane %v796, 4
    %v799 = vshll.u32 %v763, 16
    %v801 = vrot.slane %v799, 5
    %v802 = vsel %vm92, %v797, %v801
    %v803 = vshrl.u32 %v763, 16
    %v805 = vrot.slane %v803, 4
    %v806 = vor.u32 %v805, %v801
    %v807 = vrot.slane %v806, 4
    %v809 = vshll.u32 %v764, 16
    %v811 = vrot.slane %v809, 5
    %v812 = vsel %vm92, %v807, %v811
    %v819 = vrot.slane %v759, 5
    %v820 = vrot.slane %v819, 4
    %v821 = vrot.slane %v760, 5
    %v822 = vsel %vm149, %v820, %v821
    %v823 = vrot.slane %v821, 4
    %v824 = vrot.slane %v761, 5
    %v825 = vsel %vm149, %v823, %v824
    %v826 = vrot.slane %v762, 5
    %v827 = vrot.slane %v826, 4
    %v828 = vrot.slane %v763, 5
    %v829 = vsel %vm149, %v827, %v828
    %v830 = vrot.slane %v828, 4
    %v831 = vrot.slane %v764, 5
    %v832 = vsel %vm149, %v830, %v831
    %v833 = vld [vmem:[#allocation6] sm:$0xf]
    %v834 = vld [vmem:[#allocation6 + $0x4] sm:$0xf]
    %v835 = vld [vmem:[#allocation6 + $0x8] sm:$0xf]
    %v836 = vld [vmem:[#allocation6 + $0xc] sm:$0xf]
    %v837 = vld [vmem:[#allocation6 + $0x10] sm:$0xf]
    %v838 = vld [vmem:[#allocation6 + $0x14] sm:$0xf]
    %v839 = vld [vmem:[#allocation6 + $0x18] sm:$0xf]
    %v840 = vld [vmem:[#allocation6 + $0x1c] sm:$0xf]
    %v841 = vld [vmem:[#allocation6 + $0x20] sm:$0xf]
    %v842 = vld [vmem:[#allocation6 + $0x24] sm:$0xf]
    %v843 = vld [vmem:[#allocation6 + $0x28] sm:$0xf]
    %v844 = vld [vmem:[#allocation6 + $0x2c] sm:$0xf]
    %v845 = vld [vmem:[#allocation6 + $0x30] sm:$0xf]
    %v846 = vld [vmem:[#allocation6 + $0x34] sm:$0xf]
    %v847 = vld [vmem:[#allocation6 + $0x38] sm:$0xf]
    %v848 = vld [vmem:[#allocation6 + $0x3c] sm:$0xf]
    %s849 = scalar_lea.vmem [#allocation6], 64
    %v850 = vld [vmem:[%s849] sm:$0xf]
    %v851 = vld [vmem:[%s849 + $0x4] sm:$0xf]
    %v852 = vld [vmem:[%s849 + $0x8] sm:$0xf]
    %v853 = vld [vmem:[%s849 + $0xc] sm:$0xf]
    %v854 = vld [vmem:[%s849 + $0x10] sm:$0xf]
    %v855 = vld [vmem:[%s849 + $0x14] sm:$0xf]
    %v856 = vld [vmem:[%s849 + $0x18] sm:$0xf]
    %v857 = vld [vmem:[%s849 + $0x1c] sm:$0xf]
    %v858 = vld [vmem:[%s849 + $0x20] sm:$0xf]
    %v859 = vld [vmem:[%s849 + $0x24] sm:$0xf]
    %v860 = vld [vmem:[%s849 + $0x28] sm:$0xf]
    %v861 = vld [vmem:[%s849 + $0x2c] sm:$0xf]
    %v862 = vld [vmem:[%s849 + $0x30] sm:$0xf]
    %v863 = vld [vmem:[%s849 + $0x34] sm:$0xf]
    %v864 = vld [vmem:[%s849 + $0x38] sm:$0xf]
    %v865 = vld [vmem:[%s849 + $0x3c] sm:$0xf]
    %v866 = vunpack.c.l.b16 %v778
    %v867 = vunpack.c.l.b16 %v788
    %v868 = vunpack.c.l.b16 %v802
    %v869 = vunpack.c.l.b16 %v812
    %v870 = vpack.c.b16 %v867, %v866
    %v871 = vpack.c.b16 %v869, %v868
    %v890 = vunpack.c.l.b16 %v850
    %v891 = vunpack.c.l.b16 %v851
    %v892 = vunpack.c.l.b16 %v852
    %v893 = vunpack.c.l.b16 %v853
    %v894 = vunpack.c.l.b16 %v854
    %v895 = vunpack.c.l.b16 %v855
    %v896 = vunpack.c.l.b16 %v856
    %v897 = vunpack.c.l.b16 %v857
    %v898 = vunpack.c.l.b16 %v858
    %v899 = vunpack.c.l.b16 %v859
    %v900 = vunpack.c.l.b16 %v860
    %v901 = vunpack.c.l.b16 %v861
    %v902 = vunpack.c.l.b16 %v862
    %v903 = vunpack.c.l.b16 %v863
    %v904 = vunpack.c.l.b16 %v864
    %v905 = vunpack.c.l.b16 %v865
    %v906 = vpack.c.b16 %v891, %v890
    %v907 = vpack.c.b16 %v893, %v892
    %v908 = vpack.c.b16 %v895, %v894
    %v909 = vpack.c.b16 %v897, %v896
    %v910 = vpack.c.b16 %v899, %v898
    %v911 = vpack.c.b16 %v901, %v900
    %v912 = vpack.c.b16 %v903, %v902
    %v913 = vpack.c.b16 %v905, %v904
    %922 = vmatprep.subr.bf16.mxu0 0
    %923 = vmatpush1.bf16.msra.mxu0 %v906
    %924 = vmatprep.subr.bf16.mxu0 0
    %925 = vmatpush1.bf16.msra.mxu0 %v907
    %926 = vmatprep.subr.bf16.mxu0 0
    %927 = vmatpush1.bf16.msra.mxu0 %v908
    %928 = vmatprep.subr.bf16.mxu0 0
    %929 = vmatpush1.bf16.msra.mxu0 %v909
    %930 = vmatprep.subr.bf16.mxu0 0
    %931 = vmatpush1.bf16.msra.mxu0 %v910
    %932 = vmatprep.subr.bf16.mxu0 0
    %933 = vmatpush1.bf16.msra.mxu0 %v911
    %934 = vmatprep.subr.bf16.mxu0 0
    %935 = vmatpush1.bf16.msra.mxu0 %v912
    %936 = vmatprep.subr.bf16.mxu0 0
    %937 = vmatpush1.bf16.msra.mxu0 %v913
    %938 = vmatprep.subr.bf16.mxu0 0
    %939 = vmatpush1.bf16.msra.mxu0 0
    %940 = vmatprep.subr.bf16.mxu0 0
    %941 = vmatpush1.bf16.msra.mxu0 0
    %942 = vmatprep.subr.bf16.mxu0 0
    %943 = vmatpush1.bf16.msra.mxu0 0
    %944 = vmatprep.subr.bf16.mxu0 0
    %945 = vmatpush1.bf16.msra.mxu0 0
    %946 = vmatprep.subr.bf16.mxu0 0
    %947 = vmatpush1.bf16.msra.mxu0 0
    %948 = vmatprep.subr.bf16.mxu0 0
    %949 = vmatpush1.bf16.msra.mxu0 0
    %950 = vmatprep.subr.bf16.mxu0 0
    %951 = vmatpush1.bf16.msra.mxu0 0
    %952 = vmatprep.subr.bf16.mxu0 0
    %953 = vmatpush1.bf16.msra.mxu0 0
    %954 = vmatprep.mubr.bf16.mxu0 0
    %955 = vmatmul.mubr.bf16.gmra.mrb[0].mxu0 %v870
    %v956 = vpop.f32.mrb[0].mxu0
    %v957 = vadd.f32 0.0, %v956
    %v958 = vpop.f32.mrb[0].mxu0
    %v959 = vpop.f32.mrb[0].mxu0
    %v960 = vadd.f32 0.0, %v959
    %v961 = vpop.f32.mrb[0].mxu0
    %962 = vmatprep.mubr.bf16.mxu0 0
    %963 = vmatmul.mubr.bf16.gmra.mrb[0].mxu0 %v871
    %v964 = vpop.f32.mrb[0].mxu0
    %v965 = vadd.f32 0.0, %v964
    %v966 = vpop.f32.mrb[0].mxu0
    %v967 = vpop.f32.mrb[0].mxu0
    %v968 = vadd.f32 0.0, %v967
    %v969 = vpop.f32.mrb[0].mxu0
    %970 = vdwg.mxu0
    %v971 = vunpack.c.l.b16 %v759
    %v972 = vunpack.c.l.b16 %v760
    %v973 = vunpack.c.l.b16 %v762
    %v974 = vunpack.c.l.b16 %v763
    %v975 = vpack.c.b16 %v972, %v971
    %v976 = vpack.c.b16 %v974, %v973
    %v995 = vunpack.c.l.b16 %v833
    %v996 = vunpack.c.l.b16 %v834
    %v997 = vunpack.c.l.b16 %v835
    %v998 = vunpack.c.l.b16 %v836
    %v999 = vunpack.c.l.b16 %v837
    %v1000 = vunpack.c.l.b16 %v838
    %v1001 = vunpack.c.l.b16 %v839
    %v1002 = vunpack.c.l.b16 %v840
    %v1003 = vunpack.c.l.b16 %v841
    %v1004 = vunpack.c.l.b16 %v842
    %v1005 = vunpack.c.l.b16 %v843
    %v1006 = vunpack.c.l.b16 %v844
    %v1007 = vunpack.c.l.b16 %v845
    %v1008 = vunpack.c.l.b16 %v846
    %v1009 = vunpack.c.l.b16 %v847
    %v1010 = vunpack.c.l.b16 %v848
    %v1011 = vpack.c.b16 %v996, %v995
    %v1012 = vpack.c.b16 %v998, %v997
    %v1013 = vpack.c.b16 %v1000, %v999
    %v1014 = vpack.c.b16 %v1002, %v1001
    %v1015 = vpack.c.b16 %v1004, %v1003
    %v1016 = vpack.c.b16 %v1006, %v1005
    %v1017 = vpack.c.b16 %v1008, %v1007
    %v1018 = vpack.c.b16 %v1010, %v1009
    %1027 = vmatprep.subr.bf16.mxu0 0
    %1028 = vmatpush1.bf16.msra.mxu0 %v1011
    %1029 = vmatprep.subr.bf16.mxu0 0
    %1030 = vmatpush1.bf16.msra.mxu0 %v1012
    %1031 = vmatprep.subr.bf16.mxu0 0
    %1032 = vmatpush1.bf16.msra.mxu0 %v1013
    %1033 = vmatprep.subr.bf16.mxu0 0
    %1034 = vmatpush1.bf16.msra.mxu0 %v1014
    %1035 = vmatprep.subr.bf16.mxu0 0
    %1036 = vmatpush1.bf16.msra.mxu0 %v1015
    %1037 = vmatprep.subr.bf16.mxu0 0
    %1038 = vmatpush1.bf16.msra.mxu0 %v1016
    %1039 = vmatprep.subr.bf16.mxu0 0
    %1040 = vmatpush1.bf16.msra.mxu0 %v1017
    %1041 = vmatprep.subr.bf16.mxu0 0
    %1042 = vmatpush1.bf16.msra.mxu0 %v1018
    %1043 = vmatprep.subr.bf16.mxu0 0
    %1044 = vmatpush1.bf16.msra.mxu0 0
    %1045 = vmatprep.subr.bf16.mxu0 0
    %1046 = vmatpush1.bf16.msra.mxu0 0
    %1047 = vmatprep.subr.bf16.mxu0 0
    %1048 = vmatpush1.bf16.msra.mxu0 0
    %1049 = vmatprep.subr.bf16.mxu0 0
    %1050 = vmatpush1.bf16.msra.mxu0 0
    %1051 = vmatprep.subr.bf16.mxu0 0
    %1052 = vmatpush1.bf16.msra.mxu0 0
    %1053 = vmatprep.subr.bf16.mxu0 0
    %1054 = vmatpush1.bf16.msra.mxu0 0
    %1055 = vmatprep.subr.bf16.mxu0 0
    %1056 = vmatpush1.bf16.msra.mxu0 0
    %1057 = vmatprep.subr.bf16.mxu0 0
    %1058 = vmatpush1.bf16.msra.mxu0 0
    %1059 = vmatprep.mubr.bf16.mxu0 0
    %1060 = vmatmul.mubr.bf16.gmra.mrb[0].mxu0 %v975
    %v1061 = vpop.f32.mrb[0].mxu0
    %v1062 = vadd.f32 %v957, %v1061
    %v1063 = vpop.f32.mrb[0].mxu0
    %v1064 = vpop.f32.mrb[0].mxu0
    %v1065 = vadd.f32 %v960, %v1064
    %v1066 = vpop.f32.mrb[0].mxu0
    %1067 = vmatprep.mubr.bf16.mxu0 0
    %1068 = vmatmul.mubr.bf16.gmra.mrb[0].mxu0 %v976
    %v1069 = vpop.f32.mrb[0].mxu0
    %v1070 = vadd.f32 %v965, %v1069
    %v1071 = vpop.f32.mrb[0].mxu0
    %v1072 = vpop.f32.mrb[0].mxu0
    %v1073 = vadd.f32 %v968, %v1072
    %v1074 = vpop.f32.mrb[0].mxu0
    %1075 = vdwg.mxu0
    %s1076 = scalar_lea.vmem [#allocation6], 128
    %v1077 = vld [vmem:[%s1076] sm:$0xf]
    %v1078 = vld [vmem:[%s1076 + $0x4] sm:$0xf]
    %v1079 = vld [vmem:[%s1076 + $0x8] sm:$0xf]
    %v1080 = vld [vmem:[%s1076 + $0xc] sm:$0xf]
    %v1081 = vld [vmem:[%s1076 + $0x10] sm:$0xf]
    %v1082 = vld [vmem:[%s1076 + $0x14] sm:$0xf]
    %v1083 = vld [vmem:[%s1076 + $0x18] sm:$0xf]
    %v1084 = vld [vmem:[%s1076 + $0x1c] sm:$0xf]
    %v1085 = vld [vmem:[%s1076 + $0x20] sm:$0xf]
    %v1086 = vld [vmem:[%s1076 + $0x24] sm:$0xf]
    %v1087 = vld [vmem:[%s1076 + $0x28] sm:$0xf]
    %v1088 = vld [vmem:[%s1076 + $0x2c] sm:$0xf]
    %v1089 = vld [vmem:[%s1076 + $0x30] sm:$0xf]
    %v1090 = vld [vmem:[%s1076 + $0x34] sm:$0xf]
    %v1091 = vld [vmem:[%s1076 + $0x38] sm:$0xf]
    %v1092 = vld [vmem:[%s1076 + $0x3c] sm:$0xf]
    %v1093 = vunpack.c.l.b16 %v822
    %v1094 = vunpack.c.l.b16 %v825
    %v1095 = vunpack.c.l.b16 %v829
    %v1096 = vunpack.c.l.b16 %v832
    %v1097 = vpack.c.b16 %v1094, %v1093
    %v1098 = vpack.c.b16 %v1096, %v1095
    %v1117 = vunpack.c.l.b16 %v1077
    %v1118 = vunpack.c.l.b16 %v1078
    %v1119 = vunpack.c.l.b16 %v1079
    %v1120 = vunpack.c.l.b16 %v1080
    %v1121 = vunpack.c.l.b16 %v1081
    %v1122 = vunpack.c.l.b16 %v1082
    %v1123 = vunpack.c.l.b16 %v1083
    %v1124 = vunpack.c.l.b16 %v1084
    %v1125 = vunpack.c.l.b16 %v1085
    %v1126 = vunpack.c.l.b16 %v1086
    %v1127 = vunpack.c.l.b16 %v1087
    %v1128 = vunpack.c.l.b16 %v1088
    %v1129 = vunpack.c.l.b16 %v1089
    %v1130 = vunpack.c.l.b16 %v1090
    %v1131 = vunpack.c.l.b16 %v1091
    %v1132 = vunpack.c.l.b16 %v1092
    %v1133 = vpack.c.b16 %v1118, %v1117
    %v1134 = vpack.c.b16 %v1120, %v1119
    %v1135 = vpack.c.b16 %v1122, %v1121
    %v1136 = vpack.c.b16 %v1124, %v1123
    %v1137 = vpack.c.b16 %v1126, %v1125
    %v1138 = vpack.c.b16 %v1128, %v1127
    %v1139 = vpack.c.b16 %v1130, %v1129
    %v1140 = vpack.c.b16 %v1132, %v1131
    %1149 = vmatprep.subr.bf16.mxu0 0
    %1150 = vmatpush1.bf16.msra.mxu0 %v1133
    %1151 = vmatprep.subr.bf16.mxu0 0
    %1152 = vmatpush1.bf16.msra.mxu0 %v1134
    %1153 = vmatprep.subr.bf16.mxu0 0
    %1154 = vmatpush1.bf16.msra.mxu0 %v1135
    %1155 = vmatprep.subr.bf16.mxu0 0
    %1156 = vmatpush1.bf16.msra.mxu0 %v1136
    %1157 = vmatprep.subr.bf16.mxu0 0
    %1158 = vmatpush1.bf16.msra.mxu0 %v1137
    %1159 = vmatprep.subr.bf16.mxu0 0
    %1160 = vmatpush1.bf16.msra.mxu0 %v1138
    %1161 = vmatprep.subr.bf16.mxu0 0
    %1162 = vmatpush1.bf16.msra.mxu0 %v1139
    %1163 = vmatprep.subr.bf16.mxu0 0
    %1164 = vmatpush1.bf16.msra.mxu0 %v1140
    %1165 = vmatprep.subr.bf16.mxu0 0
    %1166 = vmatpush1.bf16.msra.mxu0 0
    %1167 = vmatprep.subr.bf16.mxu0 0
    %1168 = vmatpush1.bf16.msra.mxu0 0
    %1169 = vmatprep.subr.bf16.mxu0 0
    %1170 = vmatpush1.bf16.msra.mxu0 0
    %1171 = vmatprep.subr.bf16.mxu0 0
    %1172 = vmatpush1.bf16.msra.mxu0 0
    %1173 = vmatprep.subr.bf16.mxu0 0
    %1174 = vmatpush1.bf16.msra.mxu0 0
    %1175 = vmatprep.subr.bf16.mxu0 0
    %1176 = vmatpush1.bf16.msra.mxu0 0
    %1177 = vmatprep.subr.bf16.mxu0 0
    %1178 = vmatpush1.bf16.msra.mxu0 0
    %1179 = vmatprep.subr.bf16.mxu0 0
    %1180 = vmatpush1.bf16.msra.mxu0 0
    %1181 = vmatprep.mubr.bf16.mxu0 0
    %1182 = vmatmul.mubr.bf16.gmra.mrb[0].mxu0 %v1097
    %v1183 = vpop.f32.mrb[0].mxu0
    %v1184 = vadd.f32 0.0, %v1183
    %v1185 = vpop.f32.mrb[0].mxu0
    %v1186 = vpop.f32.mrb[0].mxu0
    %v1187 = vadd.f32 0.0, %v1186
    %v1188 = vpop.f32.mrb[0].mxu0
    %1189 = vmatprep.mubr.bf16.mxu0 0
    %1190 = vmatmul.mubr.bf16.gmra.mrb[0].mxu0 %v1098
    %v1191 = vpop.f32.mrb[0].mxu0
    %v1192 = vadd.f32 0.0, %v1191
    %v1193 = vpop.f32.mrb[0].mxu0
    %v1194 = vpop.f32.mrb[0].mxu0
    %v1195 = vadd.f32 0.0, %v1194
    %v1196 = vpop.f32.mrb[0].mxu0
    %1197 = vdwg.mxu0
    %v1198 = vadd.f32 %v1062, %v1184
    %v1199 = vadd.f32 %v1065, %v1187
    %v1200 = vadd.f32 %v1070, %v1192
    %v1201 = vadd.f32 %v1073, %v1195
    %v1202 = vadd.f32 %v1198, %v1199
    %v1203 = vadd.f32 %v1202, %v1200
    %v1204 = vadd.f32 %v1203, %v1201
    %v1205 = vrot.slane %v1204, 4
    %v1206 = vadd.f32 %v1204, %v1205
    %v1207 = vrot.slane %v1206, 2
    %v1208 = vadd.f32 %v1206, %v1207
    %v1209 = vrot.slane %v1208, 1
    %v1210 = vadd.f32 %v1208, %v1209
    %1211 = vrot.lane.b32.xlu0 %v1210, 8
    %v1212 = vpop.permute.xlu0 %1211
    %v1213 = vadd.f32 %v1210, %v1212
    %1214 = vrot.lane.b32.xlu0 %v1213, 16
    %v1215 = vpop.permute.xlu0 %1214
    %v1216 = vadd.f32 %v1213, %v1215
    %1217 = vrot.lane.b32.xlu0 %v1216, 32
    %v1218 = vpop.permute.xlu0 %1217
    %v1219 = vadd.f32 %v1216, %v1218
    %1220 = vrot.lane.b32.xlu0 %v1219, 64
    %v1221 = vpop.permute.xlu0 %1220
    %v1222 = vadd.f32 %v1219, %v1221
    %v1223 = vmul.f32 %v1222, 0.001953125
    %v1224 = vmul.f32 %v1198, %v1198
    %v1225 = vmul.f32 %v1199, %v1199
    %v1226 = vmul.f32 %v1200, %v1200
    %v1227 = vmul.f32 %v1201, %v1201
    %v1228 = vadd.f32 %v1224, %v1225
    %v1229 = vadd.f32 %v1228, %v1226
    %v1230 = vadd.f32 %v1229, %v1227
    %v1231 = vrot.slane %v1230, 4
    %v1232 = vadd.f32 %v1230, %v1231
    %v1233 = vrot.slane %v1232, 2
    %v1234 = vadd.f32 %v1232, %v1233
    %v1235 = vrot.slane %v1234, 1
    %v1236 = vadd.f32 %v1234, %v1235
    %1237 = vrot.lane.b32.xlu0 %v1236, 8
    %v1238 = vpop.permute.xlu0 %1237
    %v1239 = vadd.f32 %v1236, %v1238
    %1240 = vrot.lane.b32.xlu0 %v1239, 16
    %v1241 = vpop.permute.xlu0 %1240
    %v1242 = vadd.f32 %v1239, %v1241
    %1243 = vrot.lane.b32.xlu0 %v1242, 32
    %v1244 = vpop.permute.xlu0 %1243
    %v1245 = vadd.f32 %v1242, %v1244
    %1246 = vrot.lane.b32.xlu0 %v1245, 64
    %v1247 = vpop.permute.xlu0 %1246
    %v1248 = vadd.f32 %v1245, %v1247
    %v1249 = vmul.f32 %v1248, 0.001953125
    %v1250 = vmul.f32 %v1223, %v1223
    %v1251 = vsub.f32 %v1249, %v1250
    %v1252 = vld [vmem:[%s8] sm:$0x1]
    %v1253 = vadd.f32 %v1251, 1e-05
    %v1254 = vrsqrt.pop %v1253
    %v1255 = vmul.f32 %v1252, %v1254
    %v1257 = vlaneseq
    %v1258 = vshrl.u32 %v1257, 7
    %v1259 = vsub.s32 0, %v1258
    %v1260 = vrot.slane %v1255, %v1259
    %v1262 = vmul.f32 %v1198, %v1260
    %v1263 = vmul.f32 %v1199, %v1260
    %v1264 = vmul.f32 %v1200, %v1260
    %v1265 = vmul.f32 %v1201, %v1260
    %v1266 = vld [vmem:[%s9] sm:$0x1]
    %v1267 = vmul.f32 %v1223, %v1255
    %v1268 = vsub.f32 %v1266, %v1267
    %v1270 = vlaneseq
    %v1271 = vshrl.u32 %v1270, 7
    %v1272 = vsub.s32 0, %v1271
    %v1273 = vrot.slane %v1268, %v1272
    %v1275 = vadd.f32 %v1262, %v1273
    %v1276 = vadd.f32 %v1263, %v1273
    %v1277 = vadd.f32 %v1264, %v1273
    %v1278 = vadd.f32 %v1265, %v1273
    %v1279 = vadd.f32 %v1275, %v668
    %v1280 = vadd.f32 %v1276, %v669
    %v1281 = vadd.f32 %v1277, %v670
    %v1282 = vadd.f32 %v1278, %v671
    %v1283 = vmax.f32 %v1279, 0.0
    %v1284 = vmax.f32 %v1280, 0.0
    %v1285 = vmax.f32 %v1281, 0.0
    %v1286 = vmax.f32 %v1282, 0.0
    %v1287 = vpack.c.bf16 %v1284, %v1283
    %v1288 = vpack.c.bf16 %v1286, %v1285
    %v1291 = vunpack.c.l.b16 %v1287
    %v1292 = vunpack.c.h.b16 %v1287
    %v1293 = vunpack.c.l.b16 %v1288
    %v1294 = vunpack.c.h.b16 %v1288
    %v1295 = vpack.c.b16 %v1291, %v1291
    %v1296 = vpack.c.b16 %v1292, %v1292
    %v1297 = vpack.c.b16 %v1293, %v1293
    %v1298 = vpack.c.b16 %v1294, %v1294
    %v1300 = vshrl.u32 %v1295, 16
    %v1302 = vrot.slane %v1300, 7
    %v1303 = vshll.u32 %v1295, 16
    %v1305 = vor.u32 %v1302, %v1303
    %v1306 = vrot.slane %v1302, 4
    %v1308 = vshrl.u32 %v1296, 16
    %v1310 = vrot.slane %v1308, 7
    %v1311 = vshll.u32 %v1296, 16
    %v1313 = vor.u32 %v1310, %v1311
    %v1314 = vsel %vm702, %v1306, %v1313
    %v1315 = vrot.slane %v1310, 4
    %v1317 = vshrl.u32 %v1297, 16
    %v1319 = vrot.slane %v1317, 7
    %v1320 = vshll.u32 %v1297, 16
    %v1322 = vor.u32 %v1319, %v1320
    %v1323 = vrot.slane %v1319, 4
    %v1325 = vshrl.u32 %v1298, 16
    %v1327 = vrot.slane %v1325, 7
    %v1328 = vshll.u32 %v1298, 16
    %v1330 = vor.u32 %v1327, %v1328
    %v1331 = vsel %vm702, %v1323, %v1330
    %v1332 = vrot.slane %v1327, 4
    %v1339 = vsel %vm744, %v1305, %v759
    %1340 = vst [vmem:[#allocation2] sm:$0xf] %v1339
    %1341 = vst [vmem:[#allocation2 + $0x4] sm:$0xf] %v1314
    %v1342 = vld [vmem:[#allocation2 + $0x8] sm:$0x1]
    %v1343 = vsel %vm674, %v1315, %v1342
    %1344 = vst [vmem:[#allocation2 + $0x8] sm:$0x1] %v1343
    %v1345 = vld [vmem:[#allocation2 + $0xc] sm:$0xf]
    %v1346 = vsel %vm744, %v1322, %v1345
    %1347 = vst [vmem:[#allocation2 + $0xc] sm:$0xf] %v1346
    %1348 = vst [vmem:[#allocation2 + $0x10] sm:$0xf] %v1331
    %v1349 = vld [vmem:[#allocation2 + $0x14] sm:$0x1]
    %v1350 = vsel %vm674, %v1332, %v1349
    %1351 = vst [vmem:[#allocation2 + $0x14] sm:$0x1] %v1350
    %v1352 = vld [vmem:[#allocation2] sm:$0xf]
    %v1353 = vld [vmem:[#allocation2 + $0x4] sm:$0xf]
    %v1354 = vld [vmem:[#allocation2 + $0x8] sm:$0x1]
    %v1355 = vld [vmem:[#allocation2 + $0xc] sm:$0xf]
    %v1356 = vld [vmem:[#allocation2 + $0x10] sm:$0xf]
    %v1357 = vld [vmem:[#allocation2 + $0x14] sm:$0x1]
    %v1359 = vshrl.u32 %v1352, 16
    %v1361 = vrot.slane %v1359, 4
    %v1362 = vshll.u32 %v1352, 16
    %v1364 = vrot.slane %v1362, 5
    %v1365 = vor.u32 %v1361, %v1364
    %v1366 = vrot.slane %v1365, 4
    %v1368 = vshll.u32 %v1353, 16
    %v1370 = vrot.slane %v1368, 5
    %v1371 = vsel %vm92, %v1366, %v1370
    %v1372 = vshrl.u32 %v1353, 16
    %v1374 = vrot.slane %v1372, 4
    %v1375 = vor.u32 %v1374, %v1370
    %v1376 = vrot.slane %v1375, 4
    %v1378 = vshll.u32 %v1354, 16
    %v1380 = vrot.slane %v1378, 5
    %v1381 = vsel %vm92, %v1376, %v1380
    %v1383 = vshrl.u32 %v1355, 16
    %v1385 = vrot.slane %v1383, 4
    %v1386 = vshll.u32 %v1355, 16
    %v1388 = vrot.slane %v1386, 5
    %v1389 = vor.u32 %v1385, %v1388
    %v1390 = vrot.slane %v1389, 4
    %v1392 = vshll.u32 %v1356, 16
    %v1394 = vrot.slane %v1392, 5
    %v1395 = vsel %vm92, %v1390, %v1394
    %v1396 = vshrl.u32 %v1356, 16
    %v1398 = vrot.slane %v1396, 4
    %v1399 = vor.u32 %v1398, %v1394
    %v1400 = vrot.slane %v1399, 4
    %v1402 = vshll.u32 %v1357, 16
    %v1404 = vrot.slane %v1402, 5
    %v1405 = vsel %vm92, %v1400, %v1404
    %v1412 = vrot.slane %v1352, 5
    %v1413 = vrot.slane %v1412, 4
    %v1414 = vrot.slane %v1353, 5
    %v1415 = vsel %vm149, %v1413, %v1414
    %v1416 = vrot.slane %v1414, 4
    %v1417 = vrot.slane %v1354, 5
    %v1418 = vsel %vm149, %v1416, %v1417
    %v1419 = vrot.slane %v1355, 5
    %v1420 = vrot.slane %v1419, 4
    %v1421 = vrot.slane %v1356, 5
    %v1422 = vsel %vm149, %v1420, %v1421
    %v1423 = vrot.slane %v1421, 4
    %v1424 = vrot.slane %v1357, 5
    %v1425 = vsel %vm149, %v1423, %v1424
    %v1426 = vld [vmem:[%s1] sm:$0xf]
    %v1427 = vld [vmem:[%s1 + $0x4] sm:$0xf]
    %v1428 = vld [vmem:[%s1 + $0x8] sm:$0x1]
    %v1429 = vld [vmem:[%s1 + $0xc] sm:$0xf]
    %v1430 = vld [vmem:[%s1 + $0x10] sm:$0xf]
    %v1431 = vld [vmem:[%s1 + $0x14] sm:$0x1]
    %v1433 = vshrl.u32 %v1426, 16
    %v1435 = vrot.slane %v1433, 4
    %v1436 = vshll.u32 %v1426, 16
    %v1438 = vrot.slane %v1436, 5
    %v1439 = vor.u32 %v1435, %v1438
    %v1440 = vrot.slane %v1439, 4
    %v1442 = vshll.u32 %v1427, 16
    %v1444 = vrot.slane %v1442, 5
    %v1445 = vsel %vm92, %v1440, %v1444
    %v1446 = vshrl.u32 %v1427, 16
    %v1448 = vrot.slane %v1446, 4
    %v1449 = vor.u32 %v1448, %v1444
    %v1450 = vrot.slane %v1449, 4
    %v1452 = vshll.u32 %v1428, 16
    %v1454 = vrot.slane %v1452, 5
    %v1455 = vsel %vm92, %v1450, %v1454
    %v1457 = vshrl.u32 %v1429, 16
    %v1459 = vrot.slane %v1457, 4
    %v1460 = vshll.u32 %v1429, 16
    %v1462 = vrot.slane %v1460, 5
    %v1463 = vor.u32 %v1459, %v1462
    %v1464 = vrot.slane %v1463, 4
    %v1466 = vshll.u32 %v1430, 16
    %v1468 = vrot.slane %v1466, 5
    %v1469 = vsel %vm92, %v1464, %v1468
    %v1470 = vshrl.u32 %v1430, 16
    %v1472 = vrot.slane %v1470, 4
    %v1473 = vor.u32 %v1472, %v1468
    %v1474 = vrot.slane %v1473, 4
    %v1476 = vshll.u32 %v1431, 16
    %v1478 = vrot.slane %v1476, 5
    %v1479 = vsel %vm92, %v1474, %v1478
    %v1486 = vrot.slane %v1426, 5
    %v1487 = vrot.slane %v1486, 4
    %v1488 = vrot.slane %v1427, 5
    %v1489 = vsel %vm149, %v1487, %v1488
    %v1490 = vrot.slane %v1488, 4
    %v1491 = vrot.slane %v1428, 5
    %v1492 = vsel %vm149, %v1490, %v1491
    %v1493 = vrot.slane %v1429, 5
    %v1494 = vrot.slane %v1493, 4
    %v1495 = vrot.slane %v1430, 5
    %v1496 = vsel %vm149, %v1494, %v1495
    %v1497 = vrot.slane %v1495, 4
    %v1498 = vrot.slane %v1431, 5
    %v1499 = vsel %vm149, %v1497, %v1498
    %v1500 = vunpack.c.l.b16 %v1352
    %v1501 = vunpack.c.l.b16 %v1353
    %v1502 = vunpack.c.l.b16 %v1355
    %v1503 = vunpack.c.l.b16 %v1356
    %v1504 = vpack.c.b16 %v1501, %v1500
    %v1505 = vpack.c.b16 %v1503, %v1502
    %v1508 = vunpack.c.l.b16 %v1426
    %v1509 = vunpack.c.l.b16 %v1427
    %v1510 = vunpack.c.l.b16 %v1429
    %v1511 = vunpack.c.l.b16 %v1430
    %v1512 = vpack.c.b16 %v1509, %v1508
    %v1513 = vpack.c.b16 %v1511, %v1510
    %v1516 = vld [vmem:[#allocation8] sm:$0xf]
    %v1517 = vld [vmem:[#allocation8 + $0x4] sm:$0xf]
    %v1518 = vld [vmem:[#allocation8 + $0x8] sm:$0xf]
    %v1519 = vld [vmem:[#allocation8 + $0xc] sm:$0xf]
    %v1520 = vld [vmem:[#allocation8 + $0x10] sm:$0xf]
    %v1521 = vld [vmem:[#allocation8 + $0x14] sm:$0xf]
    %v1522 = vld [vmem:[#allocation8 + $0x18] sm:$0xf]
    %v1523 = vld [vmem:[#allocation8 + $0x1c] sm:$0xf]
    %v1524 = vld [vmem:[#allocation8 + $0x20] sm:$0xf]
    %v1525 = vld [vmem:[#allocation8 + $0x24] sm:$0xf]
    %v1526 = vld [vmem:[#allocation8 + $0x28] sm:$0xf]
    %v1527 = vld [vmem:[#allocation8 + $0x2c] sm:$0xf]
    %v1528 = vld [vmem:[#allocation8 + $0x30] sm:$0xf]
    %v1529 = vld [vmem:[#allocation8 + $0x34] sm:$0xf]
    %v1530 = vld [vmem:[#allocation8 + $0x38] sm:$0xf]
    %v1531 = vld [vmem:[#allocation8 + $0x3c] sm:$0xf]
    %v1532 = vld [vmem:[#allocation8 + $0x40] sm:$0xf]
    %v1533 = vld [vmem:[#allocation8 + $0x44] sm:$0xf]
    %v1534 = vld [vmem:[#allocation8 + $0x48] sm:$0xf]
    %v1535 = vld [vmem:[#allocation8 + $0x4c] sm:$0xf]
    %v1536 = vld [vmem:[#allocation8 + $0x50] sm:$0xf]
    %v1537 = vld [vmem:[#allocation8 + $0x54] sm:$0xf]
    %v1538 = vld [vmem:[#allocation8 + $0x58] sm:$0xf]
    %v1539 = vld [vmem:[#allocation8 + $0x5c] sm:$0xf]
    %v1540 = vld [vmem:[#allocation8 + $0x60] sm:$0xf]
    %v1541 = vld [vmem:[#allocation8 + $0x64] sm:$0xf]
    %v1542 = vld [vmem:[#allocation8 + $0x68] sm:$0xf]
    %v1543 = vld [vmem:[#allocation8 + $0x6c] sm:$0xf]
    %v1544 = vld [vmem:[#allocation8 + $0x70] sm:$0xf]
    %v1545 = vld [vmem:[#allocation8 + $0x74] sm:$0xf]
    %v1546 = vld [vmem:[#allocation8 + $0x78] sm:$0xf]
    %v1547 = vld [vmem:[#allocation8 + $0x7c] sm:$0xf]
    %v1548 = vunpack.c.l.b16 %v1371
    %v1549 = vunpack.c.l.b16 %v1381
    %v1550 = vunpack.c.l.b16 %v1395
    %v1551 = vunpack.c.l.b16 %v1405
    %v1552 = vpack.c.b16 %v1549, %v1548
    %v1553 = vpack.c.b16 %v1551, %v1550
    %v1556 = vunpack.c.l.b16 %v1445
    %v1557 = vunpack.c.l.b16 %v1455
    %v1558 = vunpack.c.l.b16 %v1469
    %v1559 = vunpack.c.l.b16 %v1479
    %v1560 = vpack.c.b16 %v1557, %v1556
    %v1561 = vpack.c.b16 %v1559, %v1558
    %s1564 = scalar_lea.vmem [#allocation8], 128
    %v1565 = vld [vmem:[%s1564] sm:$0xf]
    %v1566 = vld [vmem:[%s1564 + $0x4] sm:$0xf]
    %v1567 = vld [vmem:[%s1564 + $0x8] sm:$0xf]
    %v1568 = vld [vmem:[%s1564 + $0xc] sm:$0xf]
    %v1569 = vld [vmem:[%s1564 + $0x10] sm:$0xf]
    %v1570 = vld [vmem:[%s1564 + $0x14] sm:$0xf]
    %v1571 = vld [vmem:[%s1564 + $0x18] sm:$0xf]
    %v1572 = vld [vmem:[%s1564 + $0x1c] sm:$0xf]
    %v1573 = vld [vmem:[%s1564 + $0x20] sm:$0xf]
    %v1574 = vld [vmem:[%s1564 + $0x24] sm:$0xf]
    %v1575 = vld [vmem:[%s1564 + $0x28] sm:$0xf]
    %v1576 = vld [vmem:[%s1564 + $0x2c] sm:$0xf]
    %v1577 = vld [vmem:[%s1564 + $0x30] sm:$0xf]
    %v1578 = vld [vmem:[%s1564 + $0x34] sm:$0xf]
    %v1579 = vld [vmem:[%s1564 + $0x38] sm:$0xf]
    %v1580 = vld [vmem:[%s1564 + $0x3c] sm:$0xf]
    %v1581 = vld [vmem:[%s1564 + $0x40] sm:$0xf]
    %v1582 = vld [vmem:[%s1564 + $0x44] sm:$0xf]
    %v1583 = vld [vmem:[%s1564 + $0x48] sm:$0xf]
    %v1584 = vld [vmem:[%s1564 + $0x4c] sm:$0xf]
    %v1585 = vld [vmem:[%s1564 + $0x50] sm:$0xf]
    %v1586 = vld [vmem:[%s1564 + $0x54] sm:$0xf]
    %v1587 = vld [vmem:[%s1564 + $0x58] sm:$0xf]
    %v1588 = vld [vmem:[%s1564 + $0x5c] sm:$0xf]
    %v1589 = vld [vmem:[%s1564 + $0x60] sm:$0xf]
    %v1590 = vld [vmem:[%s1564 + $0x64] sm:$0xf]
    %v1591 = vld [vmem:[%s1564 + $0x68] sm:$0xf]
    %v1592 = vld [vmem:[%s1564 + $0x6c] sm:$0xf]
    %v1593 = vld [vmem:[%s1564 + $0x70] sm:$0xf]
    %v1594 = vld [vmem:[%s1564 + $0x74] sm:$0xf]
    %v1595 = vld [vmem:[%s1564 + $0x78] sm:$0xf]
    %v1596 = vld [vmem:[%s1564 + $0x7c] sm:$0xf]
    %v1629 = vunpack.c.l.b16 %v1565
    %v1630 = vunpack.c.l.b16 %v1566
    %v1631 = vunpack.c.l.b16 %v1567
    %v1632 = vunpack.c.l.b16 %v1568
    %v1633 = vunpack.c.l.b16 %v1569
    %v1634 = vunpack.c.l.b16 %v1570
    %v1635 = vunpack.c.l.b16 %v1571
    %v1636 = vunpack.c.l.b16 %v1572
    %v1637 = vunpack.c.l.b16 %v1573
    %v1638 = vunpack.c.l.b16 %v1574
    %v1639 = vunpack.c.l.b16 %v1575
    %v1640 = vunpack.c.l.b16 %v1576
    %v1641 = vunpack.c.l.b16 %v1577
    %v1642 = vunpack.c.l.b16 %v1578
    %v1643 = vunpack.c.l.b16 %v1579
    %v1644 = vunpack.c.l.b16 %v1580
    %v1645 = vunpack.c.l.b16 %v1581
    %v1646 = vunpack.c.l.b16 %v1582
    %v1647 = vunpack.c.l.b16 %v1583
    %v1648 = vunpack.c.l.b16 %v1584
    %v1649 = vunpack.c.l.b16 %v1585
    %v1650 = vunpack.c.l.b16 %v1586
    %v1651 = vunpack.c.l.b16 %v1587
    %v1652 = vunpack.c.l.b16 %v1588
    %v1653 = vunpack.c.l.b16 %v1589
    %v1654 = vunpack.c.l.b16 %v1590
    %v1655 = vunpack.c.l.b16 %v1591
    %v1656 = vunpack.c.l.b16 %v1592
    %v1657 = vunpack.c.l.b16 %v1593
    %v1658 = vunpack.c.l.b16 %v1594
    %v1659 = vunpack.c.l.b16 %v1595
    %v1660 = vunpack.c.l.b16 %v1596
    %v1661 = vpack.c.b16 %v1630, %v1629
    %v1662 = vpack.c.b16 %v1632, %v1631
    %v1663 = vpack.c.b16 %v1634, %v1633
    %v1664 = vpack.c.b16 %v1636, %v1635
    %v1665 = vpack.c.b16 %v1638, %v1637
    %v1666 = vpack.c.b16 %v1640, %v1639
    %v1667 = vpack.c.b16 %v1642, %v1641
    %v1668 = vpack.c.b16 %v1644, %v1643
    %v1669 = vpack.c.b16 %v1646, %v1645
    %v1670 = vpack.c.b16 %v1648, %v1647
    %v1671 = vpack.c.b16 %v1650, %v1649
    %v1672 = vpack.c.b16 %v1652, %v1651
    %v1673 = vpack.c.b16 %v1654, %v1653
    %v1674 = vpack.c.b16 %v1656, %v1655
    %v1675 = vpack.c.b16 %v1658, %v1657
    %v1676 = vpack.c.b16 %v1660, %v1659
    %1693 = vmatprep.subr.bf16.mxu0 0
    %1694 = vmatpush1.bf16.msra.mxu0 %v1661
    %1695 = vmatprep.subr.bf16.mxu0 0
    %1696 = vmatpush1.bf16.msra.mxu0 %v1662
    %1697 = vmatprep.subr.bf16.mxu0 0
    %1698 = vmatpush1.bf16.msra.mxu0 %v1663
    %1699 = vmatprep.subr.bf16.mxu0 0
    %1700 = vmatpush1.bf16.msra.mxu0 %v1664
    %1701 = vmatprep.subr.bf16.mxu0 0
    %1702 = vmatpush1.bf16.msra.mxu0 %v1665
    %1703 = vmatprep.subr.bf16.mxu0 0
    %1704 = vmatpush1.bf16.msra.mxu0 %v1666
    %1705 = vmatprep.subr.bf16.mxu0 0
    %1706 = vmatpush1.bf16.msra.mxu0 %v1667
    %1707 = vmatprep.subr.bf16.mxu0 0
    %1708 = vmatpush1.bf16.msra.mxu0 %v1668
    %1709 = vmatprep.subr.bf16.mxu0 0
    %1710 = vmatpush1.bf16.msra.mxu0 %v1669
    %1711 = vmatprep.subr.bf16.mxu0 0
    %1712 = vmatpush1.bf16.msra.mxu0 %v1670
    %1713 = vmatprep.subr.bf16.mxu0 0
    %1714 = vmatpush1.bf16.msra.mxu0 %v1671
    %1715 = vmatprep.subr.bf16.mxu0 0
    %1716 = vmatpush1.bf16.msra.mxu0 %v1672
    %1717 = vmatprep.subr.bf16.mxu0 0
    %1718 = vmatpush1.bf16.msra.mxu0 %v1673
    %1719 = vmatprep.subr.bf16.mxu0 0
    %1720 = vmatpush1.bf16.msra.mxu0 %v1674
    %1721 = vmatprep.subr.bf16.mxu0 0
    %1722 = vmatpush1.bf16.msra.mxu0 %v1675
    %1723 = vmatprep.subr.bf16.mxu0 0
    %1724 = vmatpush1.bf16.msra.mxu0 %v1676
    %1725 = vmatprep.mubr.bf16.mxu0 %v1560
    %1726 = vmatmul.mubr.bf16.gmra.mrb[0].mxu0 %v1552
    %v1727 = vpop.f32.mrb[0].mxu0
    %v1728 = vadd.f32 0.0, %v1727
    %v1729 = vpop.f32.mrb[0].mxu0
    %v1730 = vpop.f32.mrb[0].mxu0
    %v1731 = vadd.f32 0.0, %v1730
    %v1732 = vpop.f32.mrb[0].mxu0
    %1733 = vmatprep.mubr.bf16.mxu0 %v1561
    %1734 = vmatmul.mubr.bf16.gmra.mrb[0].mxu0 %v1553
    %v1735 = vpop.f32.mrb[0].mxu0
    %v1736 = vadd.f32 0.0, %v1735
    %v1737 = vpop.f32.mrb[0].mxu0
    %v1738 = vpop.f32.mrb[0].mxu0
    %v1739 = vadd.f32 0.0, %v1738
    %v1740 = vpop.f32.mrb[0].mxu0
    %1741 = vdwg.mxu0
    %v1774 = vunpack.c.l.b16 %v1516
    %v1775 = vunpack.c.l.b16 %v1517
    %v1776 = vunpack.c.l.b16 %v1518
    %v1777 = vunpack.c.l.b16 %v1519
    %v1778 = vunpack.c.l.b16 %v1520
    %v1779 = vunpack.c.l.b16 %v1521
    %v1780 = vunpack.c.l.b16 %v1522
    %v1781 = vunpack.c.l.b16 %v1523
    %v1782 = vunpack.c.l.b16 %v1524
    %v1783 = vunpack.c.l.b16 %v1525
    %v1784 = vunpack.c.l.b16 %v1526
    %v1785 = vunpack.c.l.b16 %v1527
    %v1786 = vunpack.c.l.b16 %v1528
    %v1787 = vunpack.c.l.b16 %v1529
    %v1788 = vunpack.c.l.b16 %v1530
    %v1789 = vunpack.c.l.b16 %v1531
    %v1790 = vunpack.c.l.b16 %v1532
    %v1791 = vunpack.c.l.b16 %v1533
    %v1792 = vunpack.c.l.b16 %v1534
    %v1793 = vunpack.c.l.b16 %v1535
    %v1794 = vunpack.c.l.b16 %v1536
    %v1795 = vunpack.c.l.b16 %v1537
    %v1796 = vunpack.c.l.b16 %v1538
    %v1797 = vunpack.c.l.b16 %v1539
    %v1798 = vunpack.c.l.b16 %v1540
    %v1799 = vunpack.c.l.b16 %v1541
    %v1800 = vunpack.c.l.b16 %v1542
    %v1801 = vunpack.c.l.b16 %v1543
    %v1802 = vunpack.c.l.b16 %v1544
    %v1803 = vunpack.c.l.b16 %v1545
    %v1804 = vunpack.c.l.b16 %v1546
    %v1805 = vunpack.c.l.b16 %v1547
    %v1806 = vpack.c.b16 %v1775, %v1774
    %v1807 = vpack.c.b16 %v1777, %v1776
    %v1808 = vpack.c.b16 %v1779, %v1778
    %v1809 = vpack.c.b16 %v1781, %v1780
    %v1810 = vpack.c.b16 %v1783, %v1782
    %v1811 = vpack.c.b16 %v1785, %v1784
    %v1812 = vpack.c.b16 %v1787, %v1786
    %v1813 = vpack.c.b16 %v1789, %v1788
    %v1814 = vpack.c.b16 %v1791, %v1790
    %v1815 = vpack.c.b16 %v1793, %v1792
    %v1816 = vpack.c.b16 %v1795, %v1794
    %v1817 = vpack.c.b16 %v1797, %v1796
    %v1818 = vpack.c.b16 %v1799, %v1798
    %v1819 = vpack.c.b16 %v1801, %v1800
    %v1820 = vpack.c.b16 %v1803, %v1802
    %v1821 = vpack.c.b16 %v1805, %v1804
    %1838 = vmatprep.subr.bf16.mxu0 0
    %1839 = vmatpush1.bf16.msra.mxu0 %v1806
    %1840 = vmatprep.subr.bf16.mxu0 0
    %1841 = vmatpush1.bf16.msra.mxu0 %v1807
    %1842 = vmatprep.subr.bf16.mxu0 0
    %1843 = vmatpush1.bf16.msra.mxu0 %v1808
    %1844 = vmatprep.subr.bf16.mxu0 0
    %1845 = vmatpush1.bf16.msra.mxu0 %v1809
    %1846 = vmatprep.subr.bf16.mxu0 0
    %1847 = vmatpush1.bf16.msra.mxu0 %v1810
    %1848 = vmatprep.subr.bf16.mxu0 0
    %1849 = vmatpush1.bf16.msra.mxu0 %v1811
    %1850 = vmatprep.subr.bf16.mxu0 0
    %1851 = vmatpush1.bf16.msra.mxu0 %v1812
    %1852 = vmatprep.subr.bf16.mxu0 0
    %1853 = vmatpush1.bf16.msra.mxu0 %v1813
    %1854 = vmatprep.subr.bf16.mxu0 0
    %1855 = vmatpush1.bf16.msra.mxu0 %v1814
    %1856 = vmatprep.subr.bf16.mxu0 0
    %1857 = vmatpush1.bf16.msra.mxu0 %v1815
    %1858 = vmatprep.subr.bf16.mxu0 0
    %1859 = vmatpush1.bf16.msra.mxu0 %v1816
    %1860 = vmatprep.subr.bf16.mxu0 0
    %1861 = vmatpush1.bf16.msra.mxu0 %v1817
    %1862 = vmatprep.subr.bf16.mxu0 0
    %1863 = vmatpush1.bf16.msra.mxu0 %v1818
    %1864 = vmatprep.subr.bf16.mxu0 0
    %1865 = vmatpush1.bf16.msra.mxu0 %v1819
    %1866 = vmatprep.subr.bf16.mxu0 0
    %1867 = vmatpush1.bf16.msra.mxu0 %v1820
    %1868 = vmatprep.subr.bf16.mxu0 0
    %1869 = vmatpush1.bf16.msra.mxu0 %v1821
    %1870 = vmatprep.mubr.bf16.mxu0 %v1512
    %1871 = vmatmul.mubr.bf16.gmra.mrb[0].mxu0 %v1504
    %v1872 = vpop.f32.mrb[0].mxu0
    %v1873 = vadd.f32 %v1728, %v1872
    %v1874 = vpop.f32.mrb[0].mxu0
    %v1875 = vpop.f32.mrb[0].mxu0
    %v1876 = vadd.f32 %v1731, %v1875
    %v1877 = vpop.f32.mrb[0].mxu0
    %1878 = vmatprep.mubr.bf16.mxu0 %v1513
    %1879 = vmatmul.mubr.bf16.gmra.mrb[0].mxu0 %v1505
    %v1880 = vpop.f32.mrb[0].mxu0
    %v1881 = vadd.f32 %v1736, %v1880
    %v1882 = vpop.f32.mrb[0].mxu0
    %v1883 = vpop.f32.mrb[0].mxu0
    %v1884 = vadd.f32 %v1739, %v1883
    %v1885 = vpop.f32.mrb[0].mxu0
    %1886 = vdwg.mxu0
    %v1887 = vunpack.c.l.b16 %v1415
    %v1888 = vunpack.c.l.b16 %v1418
    %v1889 = vunpack.c.l.b16 %v1422
    %v1890 = vunpack.c.l.b16 %v1425
    %v1891 = vpack.c.b16 %v1888, %v1887
    %v1892 = vpack.c.b16 %v1890, %v1889
    %v1895 = vunpack.c.l.b16 %v1489
    %v1896 = vunpack.c.l.b16 %v1492
    %v1897 = vunpack.c.l.b16 %v1496
    %v1898 = vunpack.c.l.b16 %v1499
    %v1899 = vpack.c.b16 %v1896, %v1895
    %v1900 = vpack.c.b16 %v1898, %v1897
    %s1903 = scalar_lea.vmem [#allocation8], 256
    %v1904 = vld [vmem:[%s1903] sm:$0xf]
    %v1905 = vld [vmem:[%s1903 + $0x4] sm:$0xf]
    %v1906 = vld [vmem:[%s1903 + $0x8] sm:$0xf]
    %v1907 = vld [vmem:[%s1903 + $0xc] sm:$0xf]
    %v1908 = vld [vmem:[%s1903 + $0x10] sm:$0xf]
    %v1909 = vld [vmem:[%s1903 + $0x14] sm:$0xf]
    %v1910 = vld [vmem:[%s1903 + $0x18] sm:$0xf]
    %v1911 = vld [vmem:[%s1903 + $0x1c] sm:$0xf]
    %v1912 = vld [vmem:[%s1903 + $0x20] sm:$0xf]
    %v1913 = vld [vmem:[%s1903 + $0x24] sm:$0xf]
    %v1914 = vld [vmem:[%s1903 + $0x28] sm:$0xf]
    %v1915 = vld [vmem:[%s1903 + $0x2c] sm:$0xf]
    %v1916 = vld [vmem:[%s1903 + $0x30] sm:$0xf]
    %v1917 = vld [vmem:[%s1903 + $0x34] sm:$0xf]
    %v1918 = vld [vmem:[%s1903 + $0x38] sm:$0xf]
    %v1919 = vld [vmem:[%s1903 + $0x3c] sm:$0xf]
    %v1920 = vld [vmem:[%s1903 + $0x40] sm:$0xf]
    %v1921 = vld [vmem:[%s1903 + $0x44] sm:$0xf]
    %v1922 = vld [vmem:[%s1903 + $0x48] sm:$0xf]
    %v1923 = vld [vmem:[%s1903 + $0x4c] sm:$0xf]
    %v1924 = vld [vmem:[%s1903 + $0x50] sm:$0xf]
    %v1925 = vld [vmem:[%s1903 + $0x54] sm:$0xf]
    %v1926 = vld [vmem:[%s1903 + $0x58] sm:$0xf]
    %v1927 = vld [vmem:[%s1903 + $0x5c] sm:$0xf]
    %v1928 = vld [vmem:[%s1903 + $0x60] sm:$0xf]
    %v1929 = vld [vmem:[%s1903 + $0x64] sm:$0xf]
    %v1930 = vld [vmem:[%s1903 + $0x68] sm:$0xf]
    %v1931 = vld [vmem:[%s1903 + $0x6c] sm:$0xf]
    %v1932 = vld [vmem:[%s1903 + $0x70] sm:$0xf]
    %v1933 = vld [vmem:[%s1903 + $0x74] sm:$0xf]
    %v1934 = vld [vmem:[%s1903 + $0x78] sm:$0xf]
    %v1935 = vld [vmem:[%s1903 + $0x7c] sm:$0xf]
    %v1968 = vunpack.c.l.b16 %v1904
    %v1969 = vunpack.c.l.b16 %v1905
    %v1970 = vunpack.c.l.b16 %v1906
    %v1971 = vunpack.c.l.b16 %v1907
    %v1972 = vunpack.c.l.b16 %v1908
    %v1973 = vunpack.c.l.b16 %v1909
    %v1974 = vunpack.c.l.b16 %v1910
    %v1975 = vunpack.c.l.b16 %v1911
    %v1976 = vunpack.c.l.b16 %v1912
    %v1977 = vunpack.c.l.b16 %v1913
    %v1978 = vunpack.c.l.b16 %v1914
    %v1979 = vunpack.c.l.b16 %v1915
    %v1980 = vunpack.c.l.b16 %v1916
    %v1981 = vunpack.c.l.b16 %v1917
    %v1982 = vunpack.c.l.b16 %v1918
    %v1983 = vunpack.c.l.b16 %v1919
    %v1984 = vunpack.c.l.b16 %v1920
    %v1985 = vunpack.c.l.b16 %v1921
    %v1986 = vunpack.c.l.b16 %v1922
    %v1987 = vunpack.c.l.b16 %v1923
    %v1988 = vunpack.c.l.b16 %v1924
    %v1989 = vunpack.c.l.b16 %v1925
    %v1990 = vunpack.c.l.b16 %v1926
    %v1991 = vunpack.c.l.b16 %v1927
    %v1992 = vunpack.c.l.b16 %v1928
    %v1993 = vunpack.c.l.b16 %v1929
    %v1994 = vunpack.c.l.b16 %v1930
    %v1995 = vunpack.c.l.b16 %v1931
    %v1996 = vunpack.c.l.b16 %v1932
    %v1997 = vunpack.c.l.b16 %v1933
    %v1998 = vunpack.c.l.b16 %v1934
    %v1999 = vunpack.c.l.b16 %v1935
    %v2000 = vpack.c.b16 %v1969, %v1968
    %v2001 = vpack.c.b16 %v1971, %v1970
    %v2002 = vpack.c.b16 %v1973, %v1972
    %v2003 = vpack.c.b16 %v1975, %v1974
    %v2004 = vpack.c.b16 %v1977, %v1976
    %v2005 = vpack.c.b16 %v1979, %v1978
    %v2006 = vpack.c.b16 %v1981, %v1980
    %v2007 = vpack.c.b16 %v1983, %v1982
    %v2008 = vpack.c.b16 %v1985, %v1984
    %v2009 = vpack.c.b16 %v1987, %v1986
    %v2010 = vpack.c.b16 %v1989, %v1988
    %v2011 = vpack.c.b16 %v1991, %v1990
    %v2012 = vpack.c.b16 %v1993, %v1992
    %v2013 = vpack.c.b16 %v1995, %v1994
    %v2014 = vpack.c.b16 %v1997, %v1996
    %v2015 = vpack.c.b16 %v1999, %v1998
    %2032 = vmatprep.subr.bf16.mxu0 0
    %2033 = vmatpush1.bf16.msra.mxu0 %v2000
    %2034 = vmatprep.subr.bf16.mxu0 0
    %2035 = vmatpush1.bf16.msra.mxu0 %v2001
    %2036 = vmatprep.subr.bf16.mxu0 0
    %2037 = vmatpush1.bf16.msra.mxu0 %v2002
    %2038 = vmatprep.subr.bf16.mxu0 0
    %2039 = vmatpush1.bf16.msra.mxu0 %v2003
    %2040 = vmatprep.subr.bf16.mxu0 0
    %2041 = vmatpush1.bf16.msra.mxu0 %v2004
    %2042 = vmatprep.subr.bf16.mxu0 0
    %2043 = vmatpush1.bf16.msra.mxu0 %v2005
    %2044 = vmatprep.subr.bf16.mxu0 0
    %2045 = vmatpush1.bf16.msra.mxu0 %v2006
    %2046 = vmatprep.subr.bf16.mxu0 0
    %2047 = vmatpush1.bf16.msra.mxu0 %v2007
    %2048 = vmatprep.subr.bf16.mxu0 0
    %2049 = vmatpush1.bf16.msra.mxu0 %v2008
    %2050 = vmatprep.subr.bf16.mxu0 0
    %2051 = vmatpush1.bf16.msra.mxu0 %v2009
    %2052 = vmatprep.subr.bf16.mxu0 0
    %2053 = vmatpush1.bf16.msra.mxu0 %v2010
    %2054 = vmatprep.subr.bf16.mxu0 0
    %2055 = vmatpush1.bf16.msra.mxu0 %v2011
    %2056 = vmatprep.subr.bf16.mxu0 0
    %2057 = vmatpush1.bf16.msra.mxu0 %v2012
    %2058 = vmatprep.subr.bf16.mxu0 0
    %2059 = vmatpush1.bf16.msra.mxu0 %v2013
    %2060 = vmatprep.subr.bf16.mxu0 0
    %2061 = vmatpush1.bf16.msra.mxu0 %v2014
    %2062 = vmatprep.subr.bf16.mxu0 0
    %2063 = vmatpush1.bf16.msra.mxu0 %v2015
    %2064 = vmatprep.mubr.bf16.mxu0 %v1899
    %2065 = vmatmul.mubr.bf16.gmra.mrb[0].mxu0 %v1891
    %v2066 = vpop.f32.mrb[0].mxu0
    %v2067 = vadd.f32 0.0, %v2066
    %v2068 = vpop.f32.mrb[0].mxu0
    %v2069 = vpop.f32.mrb[0].mxu0
    %v2070 = vadd.f32 0.0, %v2069
    %v2071 = vpop.f32.mrb[0].mxu0
    %2072 = vmatprep.mubr.bf16.mxu0 %v1900
    %2073 = vmatmul.mubr.bf16.gmra.mrb[0].mxu0 %v1892
    %v2074 = vpop.f32.mrb[0].mxu0
    %v2075 = vadd.f32 0.0, %v2074
    %v2076 = vpop.f32.mrb[0].mxu0
    %v2077 = vpop.f32.mrb[0].mxu0
    %v2078 = vadd.f32 0.0, %v2077
    %v2079 = vpop.f32.mrb[0].mxu0
    %2080 = vdwg.mxu0
    %v2081 = vadd.f32 %v1873, %v2067
    %v2082 = vadd.f32 %v1876, %v2070
    %v2083 = vadd.f32 %v1881, %v2075
    %v2084 = vadd.f32 %v1884, %v2078
    %v2085 = vld [vmem:[%s11] sm:$0x1]
    %v2087 = vlaneseq
    %v2088 = vshrl.u32 %v2087, 7
    %v2089 = vsub.s32 0, %v2088
    %v2090 = vrot.slane %v2085, %v2089
    %v2092 = vadd.f32 %v2081, %v2090
    %v2093 = vadd.f32 %v2082, %v2090
    %v2094 = vadd.f32 %v2083, %v2090
    %v2095 = vadd.f32 %v2084, %v2090
    %2096 = vst [vmem:[#allocation9] sm:$0xff] %v2092
    %2097 = vst [vmem:[#allocation9 + $0x8] sm:$0xff] %v2093
    %2098 = vst [vmem:[#allocation9 + $0x10] sm:$0xff] %v2094
    %2099 = vst [vmem:[#allocation9 + $0x18] sm:$0xff] %v2095
    // Predicated region
    $region62: #{tpu_custom_call.1} parent=1 // pred_check
      _
    $region63: #{tpu_custom_call.1} parent=1 // pred_check_branch
      %2101 = sbr.rel (0) target = $region65
    $region64: #{tpu_custom_call.1} parent=1 // pred_region
      %s2103 = ssub.s32 512, 512
      %2104 = vsyncadd [#allocation5], %s2103
      %s2105 = sshll.u32 [#allocation9], 4
      %s2106 = int_to_ptr.vmem [resolvable:$true] %s2105
      %2111 = dma.vmem_to_hbm [thread:$0]  %s2106, 512, %s12, [#allocation5], 128, 128, 8
    $region65: #{tpu_custom_call.1} parent=1 // pred_fallthru
      _
    // Predicated region
    $region66: #{tpu_custom_call.1} parent=1 // pred_check
      _
    $region67: #{tpu_custom_call.1} parent=1 // pred_check_branch
      %2113 = sbr.rel (0) target = $region69
    $region68: #{tpu_custom_call.1} parent=1 // pred_region
      %2114 = dma.done [#allocation5], 512
    $region69: #{tpu_custom_call.1} parent=1 // pred_fallthru
      _
    %2115 = vsyncpa [#allocation4], 1
    %2116 = vsyncpa [#allocation7], 1
    %2117 = vsyncpa [#allocation5], 1

</llo_original>
